<compile_context>
chip_gen: v7x
topology: tpu7x:2x2x1
jax: 0.10.0
libtpu: 0.0.40
codegen_flags: <defaults>
</compile_context>

<pallas_src>
import functools
import math

import jax
import jax.numpy as jnp
from jax import lax
from jax.experimental import pallas as pl
from jax.experimental.pallas import tpu as pltpu


# ------------------------------ fused kernel --------------------------------

def _fused_layer_kernel(x_ref, bias_ref, w_in_ref, b_in_ref, w_out_ref,
                        b_out_ref, gamma_ref, beta_ref, o_ref,
                        qkv_ref, ao_ref, *, num_heads, eps):
    """One batch element: MHA (fused QKV, per-head attn, out-proj) + res + LN."""
    S, F = x_ref.shape
    dh = F // num_heads

    # Fused QKV projection.  1/sqrt(dh) is already folded into the Q columns of
    # w_in / b_in by the wrapper.  bf16 MXU operands, f32 accumulation, then a
    # single cast of the whole (S, 3F) buffer to bf16 in VMEM scratch.
    x_bf = x_ref[...].astype(jnp.bfloat16)
    qkv_ref[...] = (jnp.dot(x_bf, w_in_ref[...],
                            preferred_element_type=jnp.float32)
                    + b_in_ref[...]).astype(jnp.bfloat16)            # (S, 3F)

    # Key-padding additive bias, broadcast ONCE (JAX does not CSE
    # broadcast_in_dim, so doing this inside the head loop repeats it H times).
    bias_b = jnp.broadcast_to(bias_ref[0], (S, S))                   # (S, S) f32

    # Per-head attention.  Each head's output goes into its dh-column slot of
    # the ao_ref scratch, so (a) the out-projection below is one K=F matmul and
    # (b) per-head temporaries do not stay live across loop iterations.
    # TODO(synk): for production S (>~2k) switch to flash-style KV tiling so the
    # per-head (S,S) scores / (S,3F) qkv stay inside v7x's 64 MiB VMEM.
    for h in range(num_heads):
        lo = h * dh
        qh = qkv_ref[:, lo:lo + dh]                                  # (S, dh) bf16
        kh = qkv_ref[:, F + lo:F + lo + dh]                          # (S, dh) bf16
        vh = qkv_ref[:, 2 * F + lo:2 * F + lo + dh]                  # (S, dh) bf16

        # scores = q k^T (scale pre-folded) + key-padding bias; softmax in f32.
        s = lax.dot_general(qh, kh, (((1,), (1,)), ((), ())),
                            preferred_element_type=jnp.float32)      # (S, S)
        s = s + bias_b
        s = s - jnp.max(s, axis=-1, keepdims=True)
        p = jnp.exp(s)
        p = p * pl.reciprocal(jnp.sum(p, axis=-1, keepdims=True), approx=True)

        ao_ref[:, lo:lo + dh] = jnp.dot(p.astype(jnp.bfloat16), vh,
                                        preferred_element_type=jnp.float32)

    # Single out-projection matmul over all heads (K = F fills the MXU).
    y = jnp.dot(ao_ref[...].astype(jnp.bfloat16), w_out_ref[...],
                preferred_element_type=jnp.float32) + b_out_ref[...]  # (S, F)

    # Residual + LayerNorm (torch.nn.LayerNorm: biased variance, f32 math).
    r = x_ref[...].astype(jnp.float32) + y
    mu = jnp.mean(r, axis=-1, keepdims=True)
    var = jnp.mean(jnp.square(r - mu), axis=-1, keepdims=True)
    out = (r - mu) * lax.rsqrt(var + eps) * gamma_ref[...] + beta_ref[...]
    o_ref[...] = out.astype(o_ref.dtype)


# ------------------------------ wrapper --------------------------------------

@functools.partial(jax.jit, static_argnames=("num_heads", "eps"))
def transformer_encoder_layer_no_ffn(src, src_key_padding_mask, params,
                                     num_heads, eps=1e-5):
    """Forward of TransformerEncoderLayerNoFFN (eval mode).

    src: (S, B, F) seq-first; src_key_padding_mask: (B, S) bool (True = padded).
    Returns: (S, B, F).
    """
    # TODO(synk): src_mask (additive attn_mask) not supported (None in this run).
    S, B, F = src.shape
    assert F % num_heads == 0
    dh = F // num_heads
    scale = 1.0 / math.sqrt(dh)

    # Seq-first layout consumed IN PLACE: (S,B,F) -> (S, B*F) is a free
    # collapse of contiguous minor dims (no HBM transpose in or out).  Each
    # grid step b reads / writes the column slab [b*F:(b+1)*F].
    # NOTE: F should be a multiple of 128 for lane-aligned (and lane-dense) blocks.
    x2d = src.reshape(S, B * F)

    # Large finite negative instead of -inf: fully-masked rows stay finite.
    bias = jnp.where(src_key_padding_mask, -1e30, 0.0).astype(jnp.float32)
    bias = bias.reshape(B, 1, S)

    # Parameter prep: fold the 1/sqrt(dh) query scale into the Q columns of the
    # fused QKV weight/bias; cast both matmul weights to bf16.
    w_in = params["w_in"].astype(jnp.float32)                        # (F, 3F)
    b_in = params["b_in"].astype(jnp.float32)                        # (3F,)
    w_in = jnp.concatenate([w_in[:, :F] * scale, w_in[:, F:]], axis=1)
    b_in = jnp.concatenate([b_in[:F] * scale, b_in[F:]])
    w_in = w_in.astype(jnp.bfloat16)
    b_in = b_in.reshape(1, 3 * F)
    w_out = params["w_out"].astype(jnp.bfloat16)                     # (F, F)
    b_out = params["b_out"].reshape(1, F).astype(jnp.float32)
    gamma = params["gamma"].reshape(1, F).astype(jnp.float32)
    beta = params["beta"].reshape(1, F).astype(jnp.float32)

    kernel = functools.partial(_fused_layer_kernel,
                               num_heads=num_heads, eps=eps)

    # Grid-invariant params: single-buffered (no pointless double-buffer DMA).
    def const_spec(shape):
        return pl.BlockSpec(shape, lambda b: (0,) * len(shape),
                            pipeline_mode=pl.Buffered(1))

    out2d = pl.pallas_call(
        kernel,
        out_shape=jax.ShapeDtypeStruct((S, B * F), src.dtype),
        grid=(B,),
        in_specs=[
            pl.BlockSpec((S, F), lambda b: (0, b)),        # x column slab of batch b
            pl.BlockSpec((1, 1, S), lambda b: (b, 0, 0)),  # key-padding bias
            const_spec((F, 3 * F)),                        # fused QKV weight (bf16)
            const_spec((1, 3 * F)),                        # fused QKV bias (f32)
            const_spec((F, F)),                            # out-proj weight (bf16)
            const_spec((1, F)),                            # out-proj bias
            const_spec((1, F)),                            # LN gamma
            const_spec((1, F)),                            # LN beta
        ],
        out_specs=pl.BlockSpec((S, F), lambda b: (0, b)),
        scratch_shapes=[
            pltpu.VMEM((S, 3 * F), jnp.bfloat16),          # qkv (single bf16 buffer)
            pltpu.VMEM((S, F), jnp.float32),               # per-head attn outputs
        ],
        compiler_params=pltpu.CompilerParams(
            dimension_semantics=("parallel",),             # batch over TCs (v7x)
            vmem_limit_bytes=48 * 1024 * 1024),            # safe on v5e/v6e/v7x
    )(x2d, bias, w_in, b_in, w_out, b_out, gamma, beta)

    return out2d.reshape(S, B, F)


# --------------------------- pure-JAX reference -------------------------------

def reference_forward(src, src_key_padding_mask, params, num_heads, eps=1e-5):
    S, B, F = src.shape
    H, dh = num_heads, F // num_heads
    x = jnp.transpose(src, (1, 0, 2)).astype(jnp.float32)
    qkv = x @ params["w_in"] + params["b_in"]
    q, k, v = jnp.split(qkv, 3, axis=-1)

    def heads(t):
        return t.reshape(B, S, H, dh).transpose(0, 2, 1, 3)

    q, k, v = heads(q), heads(k), heads(v)
    s = jnp.einsum("bhqd,bhkd->bhqk", q, k) / math.sqrt(dh)
    s = s + jnp.where(src_key_padding_mask, -1e30, 0.0)[:, None, None, :]
    p = jax.nn.softmax(s, axis=-1)
    ao = jnp.einsum("bhqk,bhkd->bhqd", p, v).transpose(0, 2, 1, 3).reshape(B, S, F)
    y = ao @ params["w_out"] + params["b_out"]
    r = x + y
    mu = r.mean(-1, keepdims=True)
    var = ((r - mu) ** 2).mean(-1, keepdims=True)
    out = (r - mu) / jnp.sqrt(var + eps) * params["gamma"] + params["beta"]
    return jnp.transpose(out, (1, 0, 2))


# ----------------------------------- main -------------------------------------

if __name__ == "__main__":
    # seq, batch, d_model, nhead (F=128 keeps blocks lane-aligned; dropout = identity)
    S, B, F, H = 8, 2, 128, 4

    root = jax.random.PRNGKey(0)
    k_src, k_win, k_bin, k_wout, k_bout, k_g, k_b = jax.random.split(root, 7)

    src = jax.random.normal(k_src, (S, B, F), jnp.float32)
    src_key_padding_mask = jnp.zeros((B, S), jnp.bool_).at[1, 6:].set(True)

    params = dict(
        w_in=jax.random.normal(k_win, (F, 3 * F), jnp.float32) * 0.02,
        b_in=jax.random.normal(k_bin, (3 * F,), jnp.float32) * 0.02,
        w_out=jax.random.normal(k_wout, (F, F), jnp.float32) * 0.02,
        b_out=jax.random.normal(k_bout, (F,), jnp.float32) * 0.02,
        gamma=1.0 + 0.1 * jax.random.normal(k_g, (F,), jnp.float32),
        beta=0.1 * jax.random.normal(k_b, (F,), jnp.float32),
    )

    out = transformer_encoder_layer_no_ffn(src, src_key_padding_mask, params,
                                           num_heads=H)
    jax.block_until_ready(out)

    ref = reference_forward(src, src_key_padding_mask, params, H)
    assert out.shape == (S, B, F)
    assert bool(jnp.isfinite(out).all())
    max_err = float(jnp.max(jnp.abs(out - ref)))
    assert bool(jnp.allclose(out, ref, atol=5e-2, rtol=5e-2)), max_err

    print("KERNEL_OK")
</pallas_src>

<mosaic_0001>
module attributes {stable_mosaic.version = 11 : i64} {
  func.func @_fused_layer_kernel(%arg0: i32, %arg1: memref<8x128xf32, #tpu.memory_space<vmem>>, %arg2: memref<1x1x8xf32, #tpu.memory_space<vmem>>, %arg3: memref<128x384xbf16, #tpu.memory_space<vmem>>, %arg4: memref<1x384xf32, #tpu.memory_space<vmem>>, %arg5: memref<128x128xbf16, #tpu.memory_space<vmem>>, %arg6: memref<1x128xf32, #tpu.memory_space<vmem>>, %arg7: memref<1x128xf32, #tpu.memory_space<vmem>>, %arg8: memref<1x128xf32, #tpu.memory_space<vmem>>, %arg9: memref<8x128xf32, #tpu.memory_space<vmem>>, %arg10: memref<8x384xbf16, #tpu.memory_space<vmem>>, %arg11: memref<8x128xf32, #tpu.memory_space<vmem>>) attributes {dimension_semantics = [#tpu.dimension_semantics<parallel>], iteration_bounds = array<i64: 2>, scalar_prefetch = 0 : i64, scratch_operands = 2 : i64, tpu.core_type = #tpu.core_type<tc>, window_params = [{transform_indices = @transform_0, window_bounds = array<i64: 8, 128>}, {transform_indices = @transform_1, window_bounds = array<i64: 1, 1, 8>}, {pipeline_mode = #tpu.pipeline_mode<synchronous>, transform_indices = @transform_2, window_bounds = array<i64: 128, 384>}, {pipeline_mode = #tpu.pipeline_mode<synchronous>, transform_indices = @transform_3, window_bounds = array<i64: 1, 384>}, {pipeline_mode = #tpu.pipeline_mode<synchronous>, transform_indices = @transform_4, window_bounds = array<i64: 128, 128>}, {pipeline_mode = #tpu.pipeline_mode<synchronous>, transform_indices = @transform_5, window_bounds = array<i64: 1, 128>}, {pipeline_mode = #tpu.pipeline_mode<synchronous>, transform_indices = @transform_6, window_bounds = array<i64: 1, 128>}, {pipeline_mode = #tpu.pipeline_mode<synchronous>, transform_indices = @transform_7, window_bounds = array<i64: 1, 128>}, {transform_indices = @transform_8, window_bounds = array<i64: 8, 128>}]} {
    %c0 = arith.constant 0 : index
    %c0_0 = arith.constant 0 : index
    %0 = vector.load %arg1[%c0, %c0_0] : memref<8x128xf32, #tpu.memory_space<vmem>>, vector<8x128xf32>
    %1 = arith.truncf %0 : vector<8x128xf32> to vector<8x128xbf16>
    %c0_1 = arith.constant 0 : index
    %c0_2 = arith.constant 0 : index
    %2 = vector.load %arg3[%c0_1, %c0_2] : memref<128x384xbf16, #tpu.memory_space<vmem>>, vector<128x384xbf16>
    %cst = arith.constant dense<0.000000e+00> : vector<8x384xf32>
    %3 = tpu.matmul %1, %2, %cst {dimension_numbers = #tpu.dot_dimension_numbers<[1], [0], [0], [1], [0, 0, 1, 1], [], []>} : vector<8x128xbf16>, vector<128x384xbf16>, vector<8x384xf32> -> vector<8x384xf32>
    %c0_3 = arith.constant 0 : index
    %c0_4 = arith.constant 0 : index
    %4 = vector.load %arg4[%c0_3, %c0_4] : memref<1x384xf32, #tpu.memory_space<vmem>>, vector<1x384xf32>
    %5 = vector.broadcast %4 : vector<1x384xf32> to vector<8x384xf32>
    %6 = arith.addf %3, %5 : vector<8x384xf32>
    %7 = arith.truncf %6 : vector<8x384xf32> to vector<8x384xbf16>
    %c0_5 = arith.constant 0 : index
    %c0_6 = arith.constant 0 : index
    %8 = vector.load %arg10[%c0_5, %c0_6] : memref<8x384xbf16, #tpu.memory_space<vmem>>, vector<8x384xbf16>
    tpu.vector_store %arg10[%c0_5, %c0_6], %7 {strides = array<i32>} : memref<8x384xbf16, #tpu.memory_space<vmem>>, vector<8x384xbf16>,
    %c0_7 = arith.constant 0 : index
    %c0_8 = arith.constant 0 : index
    %c0_9 = arith.constant 0 : index
    %9 = vector.load %arg2[%c0_7, %c0_8, %c0_9] : memref<1x1x8xf32, #tpu.memory_space<vmem>>, vector<1x1x8xf32>
    %10 = vector.shape_cast %9 : vector<1x1x8xf32> to vector<1x8xf32>
    %11 = vector.shape_cast %10 : vector<1x8xf32> to vector<1x8xf32>
    %12 = vector.broadcast %11 : vector<1x8xf32> to vector<8x8xf32>
    %c0_10 = arith.constant 0 : index
    %c0_11 = arith.constant 0 : index
    %13 = vector.load %arg10[%c0_10, %c0_11] : memref<8x384xbf16, #tpu.memory_space<vmem>>, vector<8x32xbf16>
    %c0_12 = arith.constant 0 : index
    %c128 = arith.constant 128 : index
    %14 = vector.load %arg10[%c0_12, %c128] : memref<8x384xbf16, #tpu.memory_space<vmem>>, vector<8x32xbf16>
    %c0_13 = arith.constant 0 : index
    %c256 = arith.constant 256 : index
    %15 = vector.load %arg10[%c0_13, %c256] : memref<8x384xbf16, #tpu.memory_space<vmem>>, vector<8x32xbf16>
    %cst_14 = arith.constant dense<0.000000e+00> : vector<8x8xf32>
    %16 = tpu.matmul %13, %14, %cst_14 {dimension_numbers = #tpu.dot_dimension_numbers<[1], [1], [0], [0], [0, 0, 1, 0], [], []>} : vector<8x32xbf16>, vector<8x32xbf16>, vector<8x8xf32> -> vector<8x8xf32>
    %17 = arith.addf %16, %12 : vector<8x8xf32>
    %cst_15 = arith.constant dense<0xFF800000> : vector<8xf32>
    %18 = vector.multi_reduction <maximumf>, %17, %cst_15 [1] : vector<8x8xf32> to vector<8xf32>
    %19 = vector.shape_cast %18 : vector<8xf32> to vector<8x1xf32>
    %20 = vector.broadcast %19 : vector<8x1xf32> to vector<8x8xf32>
    %21 = arith.subf %17, %20 : vector<8x8xf32>
    %22 = math.exp %21 : vector<8x8xf32>
    %cst_16 = arith.constant dense<0.000000e+00> : vector<8xf32>
    %23 = vector.multi_reduction <add>, %22, %cst_16 [1] : vector<8x8xf32> to vector<8xf32>
    %24 = vector.shape_cast %23 : vector<8xf32> to vector<8x1xf32>
    %25 = tpu.reciprocal %24 {approx = true} : vector<8x1xf32> -> vector<8x1xf32>
    %26 = vector.broadcast %25 : vector<8x1xf32> to vector<8x8xf32>
    %27 = arith.mulf %22, %26 : vector<8x8xf32>
    %28 = arith.truncf %27 : vector<8x8xf32> to vector<8x8xbf16>
    %cst_17 = arith.constant dense<0.000000e+00> : vector<8x32xf32>
    %29 = tpu.matmul %28, %15, %cst_17 {dimension_numbers = #tpu.dot_dimension_numbers<[1], [0], [0], [1], [0, 0, 1, 1], [], []>} : vector<8x8xbf16>, vector<8x32xbf16>, vector<8x32xf32> -> vector<8x32xf32>
    %c0_18 = arith.constant 0 : index
    %c0_19 = arith.constant 0 : index
    %30 = vector.load %arg11[%c0_18, %c0_19] : memref<8x128xf32, #tpu.memory_space<vmem>>, vector<8x32xf32>
    tpu.vector_store %arg11[%c0_18, %c0_19], %29 {strides = array<i32>} : memref<8x128xf32, #tpu.memory_space<vmem>>, vector<8x32xf32>,
    %c0_20 = arith.constant 0 : index
    %c32 = arith.constant 32 : index
    %31 = vector.load %arg10[%c0_20, %c32] : memref<8x384xbf16, #tpu.memory_space<vmem>>, vector<8x32xbf16>
    %c0_21 = arith.constant 0 : index
    %c160 = arith.constant 160 : index
    %32 = vector.load %arg10[%c0_21, %c160] : memref<8x384xbf16, #tpu.memory_space<vmem>>, vector<8x32xbf16>
    %c0_22 = arith.constant 0 : index
    %c288 = arith.constant 288 : index
    %33 = vector.load %arg10[%c0_22, %c288] : memref<8x384xbf16, #tpu.memory_space<vmem>>, vector<8x32xbf16>
    %cst_23 = arith.constant dense<0.000000e+00> : vector<8x8xf32>
    %34 = tpu.matmul %31, %32, %cst_23 {dimension_numbers = #tpu.dot_dimension_numbers<[1], [1], [0], [0], [0, 0, 1, 0], [], []>} : vector<8x32xbf16>, vector<8x32xbf16>, vector<8x8xf32> -> vector<8x8xf32>
    %35 = arith.addf %34, %12 : vector<8x8xf32>
    %cst_24 = arith.constant dense<0xFF800000> : vector<8xf32>
    %36 = vector.multi_reduction <maximumf>, %35, %cst_24 [1] : vector<8x8xf32> to vector<8xf32>
    %37 = vector.shape_cast %36 : vector<8xf32> to vector<8x1xf32>
    %38 = vector.broadcast %37 : vector<8x1xf32> to vector<8x8xf32>
    %39 = arith.subf %35, %38 : vector<8x8xf32>
    %40 = math.exp %39 : vector<8x8xf32>
    %cst_25 = arith.constant dense<0.000000e+00> : vector<8xf32>
    %41 = vector.multi_reduction <add>, %40, %cst_25 [1] : vector<8x8xf32> to vector<8xf32>
    %42 = vector.shape_cast %41 : vector<8xf32> to vector<8x1xf32>
    %43 = tpu.reciprocal %42 {approx = true} : vector<8x1xf32> -> vector<8x1xf32>
    %44 = vector.broadcast %43 : vector<8x1xf32> to vector<8x8xf32>
    %45 = arith.mulf %40, %44 : vector<8x8xf32>
    %46 = arith.truncf %45 : vector<8x8xf32> to vector<8x8xbf16>
    %cst_26 = arith.constant dense<0.000000e+00> : vector<8x32xf32>
    %47 = tpu.matmul %46, %33, %cst_26 {dimension_numbers = #tpu.dot_dimension_numbers<[1], [0], [0], [1], [0, 0, 1, 1], [], []>} : vector<8x8xbf16>, vector<8x32xbf16>, vector<8x32xf32> -> vector<8x32xf32>
    %c0_27 = arith.constant 0 : index
    %c32_28 = arith.constant 32 : index
    %48 = vector.load %arg11[%c0_27, %c32_28] : memref<8x128xf32, #tpu.memory_space<vmem>>, vector<8x32xf32>
    tpu.vector_store %arg11[%c0_27, %c32_28], %47 {strides = array<i32>} : memref<8x128xf32, #tpu.memory_space<vmem>>, vector<8x32xf32>,
    %c0_29 = arith.constant 0 : index
    %c64 = arith.constant 64 : index
    %49 = vector.load %arg10[%c0_29, %c64] : memref<8x384xbf16, #tpu.memory_space<vmem>>, vector<8x32xbf16>
    %c0_30 = arith.constant 0 : index
    %c192 = arith.constant 192 : index
    %50 = vector.load %arg10[%c0_30, %c192] : memref<8x384xbf16, #tpu.memory_space<vmem>>, vector<8x32xbf16>
    %c0_31 = arith.constant 0 : index
    %c320 = arith.constant 320 : index
    %51 = vector.load %arg10[%c0_31, %c320] : memref<8x384xbf16, #tpu.memory_space<vmem>>, vector<8x32xbf16>
    %cst_32 = arith.constant dense<0.000000e+00> : vector<8x8xf32>
    %52 = tpu.matmul %49, %50, %cst_32 {dimension_numbers = #tpu.dot_dimension_numbers<[1], [1], [0], [0], [0, 0, 1, 0], [], []>} : vector<8x32xbf16>, vector<8x32xbf16>, vector<8x8xf32> -> vector<8x8xf32>
    %53 = arith.addf %52, %12 : vector<8x8xf32>
    %cst_33 = arith.constant dense<0xFF800000> : vector<8xf32>
    %54 = vector.multi_reduction <maximumf>, %53, %cst_33 [1] : vector<8x8xf32> to vector<8xf32>
    %55 = vector.shape_cast %54 : vector<8xf32> to vector<8x1xf32>
    %56 = vector.broadcast %55 : vector<8x1xf32> to vector<8x8xf32>
    %57 = arith.subf %53, %56 : vector<8x8xf32>
    %58 = math.exp %57 : vector<8x8xf32>
    %cst_34 = arith.constant dense<0.000000e+00> : vector<8xf32>
    %59 = vector.multi_reduction <add>, %58, %cst_34 [1] : vector<8x8xf32> to vector<8xf32>
    %60 = vector.shape_cast %59 : vector<8xf32> to vector<8x1xf32>
    %61 = tpu.reciprocal %60 {approx = true} : vector<8x1xf32> -> vector<8x1xf32>
    %62 = vector.broadcast %61 : vector<8x1xf32> to vector<8x8xf32>
    %63 = arith.mulf %58, %62 : vector<8x8xf32>
    %64 = arith.truncf %63 : vector<8x8xf32> to vector<8x8xbf16>
    %cst_35 = arith.constant dense<0.000000e+00> : vector<8x32xf32>
    %65 = tpu.matmul %64, %51, %cst_35 {dimension_numbers = #tpu.dot_dimension_numbers<[1], [0], [0], [1], [0, 0, 1, 1], [], []>} : vector<8x8xbf16>, vector<8x32xbf16>, vector<8x32xf32> -> vector<8x32xf32>
    %c0_36 = arith.constant 0 : index
    %c64_37 = arith.constant 64 : index
    %66 = vector.load %arg11[%c0_36, %c64_37] : memref<8x128xf32, #tpu.memory_space<vmem>>, vector<8x32xf32>
    tpu.vector_store %arg11[%c0_36, %c64_37], %65 {strides = array<i32>} : memref<8x128xf32, #tpu.memory_space<vmem>>, vector<8x32xf32>,
    %c0_38 = arith.constant 0 : index
    %c96 = arith.constant 96 : index
    %67 = vector.load %arg10[%c0_38, %c96] : memref<8x384xbf16, #tpu.memory_space<vmem>>, vector<8x32xbf16>
    %c0_39 = arith.constant 0 : index
    %c224 = arith.constant 224 : index
    %68 = vector.load %arg10[%c0_39, %c224] : memref<8x384xbf16, #tpu.memory_space<vmem>>, vector<8x32xbf16>
    %c0_40 = arith.constant 0 : index
    %c352 = arith.constant 352 : index
    %69 = vector.load %arg10[%c0_40, %c352] : memref<8x384xbf16, #tpu.memory_space<vmem>>, vector<8x32xbf16>
    %cst_41 = arith.constant dense<0.000000e+00> : vector<8x8xf32>
    %70 = tpu.matmul %67, %68, %cst_41 {dimension_numbers = #tpu.dot_dimension_numbers<[1], [1], [0], [0], [0, 0, 1, 0], [], []>} : vector<8x32xbf16>, vector<8x32xbf16>, vector<8x8xf32> -> vector<8x8xf32>
    %71 = arith.addf %70, %12 : vector<8x8xf32>
    %cst_42 = arith.constant dense<0xFF800000> : vector<8xf32>
    %72 = vector.multi_reduction <maximumf>, %71, %cst_42 [1] : vector<8x8xf32> to vector<8xf32>
    %73 = vector.shape_cast %72 : vector<8xf32> to vector<8x1xf32>
    %74 = vector.broadcast %73 : vector<8x1xf32> to vector<8x8xf32>
    %75 = arith.subf %71, %74 : vector<8x8xf32>
    %76 = math.exp %75 : vector<8x8xf32>
    %cst_43 = arith.constant dense<0.000000e+00> : vector<8xf32>
    %77 = vector.multi_reduction <add>, %76, %cst_43 [1] : vector<8x8xf32> to vector<8xf32>
    %78 = vector.shape_cast %77 : vector<8xf32> to vector<8x1xf32>
    %79 = tpu.reciprocal %78 {approx = true} : vector<8x1xf32> -> vector<8x1xf32>
    %80 = vector.broadcast %79 : vector<8x1xf32> to vector<8x8xf32>
    %81 = arith.mulf %76, %80 : vector<8x8xf32>
    %82 = arith.truncf %81 : vector<8x8xf32> to vector<8x8xbf16>
    %cst_44 = arith.constant dense<0.000000e+00> : vector<8x32xf32>
    %83 = tpu.matmul %82, %69, %cst_44 {dimension_numbers = #tpu.dot_dimension_numbers<[1], [0], [0], [1], [0, 0, 1, 1], [], []>} : vector<8x8xbf16>, vector<8x32xbf16>, vector<8x32xf32> -> vector<8x32xf32>
    %c0_45 = arith.constant 0 : index
    %c96_46 = arith.constant 96 : index
    %84 = vector.load %arg11[%c0_45, %c96_46] : memref<8x128xf32, #tpu.memory_space<vmem>>, vector<8x32xf32>
    tpu.vector_store %arg11[%c0_45, %c96_46], %83 {strides = array<i32>} : memref<8x128xf32, #tpu.memory_space<vmem>>, vector<8x32xf32>,
    %c0_47 = arith.constant 0 : index
    %c0_48 = arith.constant 0 : index
    %85 = vector.load %arg11[%c0_47, %c0_48] : memref<8x128xf32, #tpu.memory_space<vmem>>, vector<8x128xf32>
    %86 = arith.truncf %85 : vector<8x128xf32> to vector<8x128xbf16>
    %c0_49 = arith.constant 0 : index
    %c0_50 = arith.constant 0 : index
    %87 = vector.load %arg5[%c0_49, %c0_50] : memref<128x128xbf16, #tpu.memory_space<vmem>>, vector<128x128xbf16>
    %cst_51 = arith.constant dense<0.000000e+00> : vector<8x128xf32>
    %88 = tpu.matmul %86, %87, %cst_51 {dimension_numbers = #tpu.dot_dimension_numbers<[1], [0], [0], [1], [0, 0, 1, 1], [], []>} : vector<8x128xbf16>, vector<128x128xbf16>, vector<8x128xf32> -> vector<8x128xf32>
    %c0_52 = arith.constant 0 : index
    %c0_53 = arith.constant 0 : index
    %89 = vector.load %arg6[%c0_52, %c0_53] : memref<1x128xf32, #tpu.memory_space<vmem>>, vector<1x128xf32>
    %90 = vector.broadcast %89 : vector<1x128xf32> to vector<8x128xf32>
    %91 = arith.addf %88, %90 : vector<8x128xf32>
    %c0_54 = arith.constant 0 : index
    %c0_55 = arith.constant 0 : index
    %92 = vector.load %arg1[%c0_54, %c0_55] : memref<8x128xf32, #tpu.memory_space<vmem>>, vector<8x128xf32>
    %93 = arith.addf %92, %91 : vector<8x128xf32>
    %cst_56 = arith.constant dense<0.000000e+00> : vector<8xf32>
    %94 = vector.multi_reduction <add>, %93, %cst_56 [1] : vector<8x128xf32> to vector<8xf32>
    %95 = vector.shape_cast %94 : vector<8xf32> to vector<8x1xf32>
    %cst_57 = arith.constant 1.280000e+02 : f32
    %96 = vector.broadcast %cst_57 : f32 to vector<8x1xf32>
    %97 = arith.divf %95, %96 : vector<8x1xf32>
    %98 = vector.broadcast %97 : vector<8x1xf32> to vector<8x128xf32>
    %99 = arith.subf %93, %98 : vector<8x128xf32>
    %100 = arith.mulf %99, %99 : vector<8x128xf32>
    %cst_58 = arith.constant dense<0.000000e+00> : vector<8xf32>
    %101 = vector.multi_reduction <add>, %100, %cst_58 [1] : vector<8x128xf32> to vector<8xf32>
    %102 = vector.shape_cast %101 : vector<8xf32> to vector<8x1xf32>
    %cst_59 = arith.constant 1.280000e+02 : f32
    %103 = vector.broadcast %cst_59 : f32 to vector<8x1xf32>
    %104 = arith.divf %102, %103 : vector<8x1xf32>
    %105 = vector.broadcast %97 : vector<8x1xf32> to vector<8x128xf32>
    %106 = arith.subf %93, %105 : vector<8x128xf32>
    %cst_60 = arith.constant 9.99999974E-6 : f32
    %107 = vector.broadcast %cst_60 : f32 to vector<8x1xf32>
    %108 = arith.addf %104, %107 : vector<8x1xf32>
    %109 = math.rsqrt %108 : vector<8x1xf32>
    %110 = vector.broadcast %109 : vector<8x1xf32> to vector<8x128xf32>
    %111 = arith.mulf %106, %110 : vector<8x128xf32>
    %c0_61 = arith.constant 0 : index
    %c0_62 = arith.constant 0 : index
    %112 = vector.load %arg7[%c0_61, %c0_62] : memref<1x128xf32, #tpu.memory_space<vmem>>, vector<1x128xf32>
    %113 = vector.broadcast %112 : vector<1x128xf32> to vector<8x128xf32>
    %114 = arith.mulf %111, %113 : vector<8x128xf32>
    %c0_63 = arith.constant 0 : index
    %c0_64 = arith.constant 0 : index
    %115 = vector.load %arg8[%c0_63, %c0_64] : memref<1x128xf32, #tpu.memory_space<vmem>>, vector<1x128xf32>
    %116 = vector.broadcast %115 : vector<1x128xf32> to vector<8x128xf32>
    %117 = arith.addf %114, %116 : vector<8x128xf32>
    %c0_65 = arith.constant 0 : index
    %c0_66 = arith.constant 0 : index
    %118 = vector.load %arg9[%c0_65, %c0_66] : memref<8x128xf32, #tpu.memory_space<vmem>>, vector<8x128xf32>
    tpu.vector_store %arg9[%c0_65, %c0_66], %117 {strides = array<i32>} : memref<8x128xf32, #tpu.memory_space<vmem>>, vector<8x128xf32>,
    return
  }
  func.func @transform_0(%arg0: i32) -> (i32, i32) {
    %c0_i32 = arith.constant 0 : i32
    %c0_i32_0 = arith.constant 0 : i32
    return %c0_i32, %arg0 : i32, i32
  }
  func.func @transform_1(%arg0: i32) -> (i32, i32, i32) {
    %c0_i32 = arith.constant 0 : i32
    %c0_i32_0 = arith.constant 0 : i32
    %c0_i32_1 = arith.constant 0 : i32
    return %arg0, %c0_i32, %c0_i32_0 : i32, i32, i32
  }
  func.func @transform_2(%arg0: i32) -> (i32, i32) {
    %c0_i32 = arith.constant 0 : i32
    %c0_i32_0 = arith.constant 0 : i32
    %c0_i32_1 = arith.constant 0 : i32
    return %c0_i32, %c0_i32_0 : i32, i32
  }
  func.func @transform_3(%arg0: i32) -> (i32, i32) {
    %c0_i32 = arith.constant 0 : i32
    %c0_i32_0 = arith.constant 0 : i32
    %c0_i32_1 = arith.constant 0 : i32
    return %c0_i32, %c0_i32_0 : i32, i32
  }
  func.func @transform_4(%arg0: i32) -> (i32, i32) {
    %c0_i32 = arith.constant 0 : i32
    %c0_i32_0 = arith.constant 0 : i32
    %c0_i32_1 = arith.constant 0 : i32
    return %c0_i32, %c0_i32_0 : i32, i32
  }
  func.func @transform_5(%arg0: i32) -> (i32, i32) {
    %c0_i32 = arith.constant 0 : i32
    %c0_i32_0 = arith.constant 0 : i32
    %c0_i32_1 = arith.constant 0 : i32
    return %c0_i32, %c0_i32_0 : i32, i32
  }
  func.func @transform_6(%arg0: i32) -> (i32, i32) {
    %c0_i32 = arith.constant 0 : i32
    %c0_i32_0 = arith.constant 0 : i32
    %c0_i32_1 = arith.constant 0 : i32
    return %c0_i32, %c0_i32_0 : i32, i32
  }
  func.func @transform_7(%arg0: i32) -> (i32, i32) {
    %c0_i32 = arith.constant 0 : i32
    %c0_i32_0 = arith.constant 0 : i32
    %c0_i32_1 = arith.constant 0 : i32
    return %c0_i32, %c0_i32_0 : i32, i32
  }
  func.func @transform_8(%arg0: i32) -> (i32, i32) {
    %c0_i32 = arith.constant 0 : i32
    %c0_i32_0 = arith.constant 0 : i32
    return %c0_i32, %arg0 : i32, i32
  }
}

</mosaic_0001>

<llo_original>
// kernel: transformer_encoder_layer_no_ffn.1
$region0: #{transformer_encoder_layer_no_ffn.1}
  #allocation0 [shape = 'u32[]', space=smem, size = 0x4, offset = 0x4, fixed_abs, tag = 'smem constant byte address 0x4 - core index']
  #allocation1 [shape = 'u32[144,128]{1,0:T(1,128)}', space=vmem, size = 0x12000, scoped, tag = 'internal scratch']
  #allocation2 [shape = 'bf16[8,384]{1,0:T(8,128)(2,1)}', space=vmem, size = 0x1800, scoped, tag = 'scratch operand']
  #allocation3 [shape = 'f32[8,128]{1,0:T(8,128)}', space=vmem, size = 0x1000, scoped, tag = 'scratch operand']
  %s0 = inlined_call_operand.vmem [shape: f32[8,256], index: 0, kind: input, shape index: {}]
  %s1 = inlined_call_operand.vmem [shape: f32[2,1,8], index: 1, kind: input, shape index: {}]
  %s2 = inlined_call_operand.vmem [shape: bf16[128,384], index: 2, kind: input, shape index: {}]
  %s3 = inlined_call_operand.vmem [shape: f32[1,384], index: 3, kind: input, shape index: {}]
  %s4 = inlined_call_operand.vmem [shape: bf16[128,128], index: 4, kind: input, shape index: {}]
  %s5 = inlined_call_operand.vmem [shape: f32[1,128], index: 5, kind: input, shape index: {}]
  %s6 = inlined_call_operand.vmem [shape: f32[1,128], index: 6, kind: input, shape index: {}]
  %s7 = inlined_call_operand.vmem [shape: f32[1,128], index: 7, kind: input, shape index: {}]
  %s8 = inlined_call_operand.vmem [shape: f32[8,256], index: 8, kind: output, shape index: {}]
  %s9 = sld [smem:[#allocation0]]
  $region65: #{transformer_encoder_layer_no_ffn.1} parent=0
    _
  %s11 = ssub.s32 1, %s9
  %s12 = scalar_select 0, %s11, %s9
  loop: start=0, step=1, limit=4
  $region2: #{transformer_encoder_layer_no_ffn.1} parent=0 // loop_pre_header
    _
  $region3: #{transformer_encoder_layer_no_ffn.1} parent=0 // loop_header
    %s14 = sphi 0, %s18
    %p15 = scmp.ge.s32.totalorder %s14, 4
    %s24 = sphi 0, %s26
    %s27 = sphi 0, %s24
    %s28 = sphi 0, %s27
    %s44 = sphi 0, %s28
    %s50 = sphi 0, %s52
    %s53 = sphi 0, %s50
    %s54 = sphi 0, %s53
    %s70 = sphi 0, %s54
    %s74 = sphi 0, %s74
    %s76 = sphi 0, %s74
    %s77 = sphi 0, %s76
    %s91 = sphi 0, %s77
    %s95 = sphi 0, %s95
    %s97 = sphi 0, %s95
    %s98 = sphi 0, %s97
    %s112 = sphi 0, %s98
    %s116 = sphi 0, %s116
    %s118 = sphi 0, %s116
    %s119 = sphi 0, %s118
    %s133 = sphi 0, %s119
    %s137 = sphi 0, %s137
    %s139 = sphi 0, %s137
    %s140 = sphi 0, %s139
    %s154 = sphi 0, %s140
    %s158 = sphi 0, %s158
    %s160 = sphi 0, %s158
    %s161 = sphi 0, %s160
    %s175 = sphi 0, %s161
    %s179 = sphi 0, %s179
    %s181 = sphi 0, %s179
    %s182 = sphi 0, %s181
    %s196 = sphi 0, %s182
    %s202 = sphi 0, %s204
    %s205 = sphi 0, %s202
    %s206 = sphi 0, %s205
    %s222 = sphi 0, %s206
  $region4: #{transformer_encoder_layer_no_ffn.1} parent=0 // loop_header_branch
    %17 = sbr.rel (%p15) target = $region8
  $region5: #{transformer_encoder_layer_no_ffn.1} parent=0 // loop_body
    %s19 = ssub.s32 %s14, 1
    %s20 = ssub.s32 %s14, 2
    %s21 = sadd.s32 %s14, 1
    %s22 = ssub.s32 %s14, %s21
    %p23 = scmp.eq.s32.totalorder %s22, 0
    %s25 = sadd.s32 %s24, 1
    %s26 = scalar_select %p23, %s24, %s25
    %p29 = pneg %p23
    %p30 = scmp.eq.s32.totalorder %s14, 1
    %p31 = por %p29, %p30
    %p32 = scmp.ne.s32.totalorder %s24, %s27
    %p33 = scmp.eq.s32.totalorder %s14, 0
    %p34 = por %p32, %p33
    %p35 = scmp.ne.s32.totalorder %s24, %s27
    %p36 = scmp.eq.s32.totalorder %s19, 1
    %p37 = por %p35, %p36
    %p38 = scmp.ne.s32.totalorder %s27, %s28
    %p39 = scmp.eq.s32.totalorder %s19, 0
    %p40 = por %p38, %p39
    %p41 = scmp.ne.s32.totalorder %s27, %s28
    %p42 = scmp.eq.s32.totalorder %s20, 1
    %p43 = por %p41, %p42
    %p45 = scmp.ne.s32.totalorder %s28, %s44
    %p46 = scmp.eq.s32.totalorder %s20, 0
    %p47 = por %p45, %p46
    %s48 = ssub.s32 %s14, %s21
    %p49 = scmp.eq.s32.totalorder %s48, 0
    %s51 = sadd.s32 %s50, 1
    %s52 = scalar_select %p49, %s50, %s51
    %p55 = pneg %p49
    %p56 = scmp.eq.s32.totalorder %s14, 1
    %p57 = por %p55, %p56
    %p58 = scmp.ne.s32.totalorder %s50, %s53
    %p59 = scmp.eq.s32.totalorder %s14, 0
    %p60 = por %p58, %p59
    %p61 = scmp.ne.s32.totalorder %s50, %s53
    %p62 = scmp.eq.s32.totalorder %s19, 1
    %p63 = por %p61, %p62
    %p64 = scmp.ne.s32.totalorder %s53, %s54
    %p65 = scmp.eq.s32.totalorder %s19, 0
    %p66 = por %p64, %p65
    %p67 = scmp.ne.s32.totalorder %s53, %s54
    %p68 = scmp.eq.s32.totalorder %s20, 1
    %p69 = por %p67, %p68
    %p71 = scmp.ne.s32.totalorder %s54, %s70
    %p72 = scmp.eq.s32.totalorder %s20, 0
    %p73 = por %p71, %p72
    %s75 = sadd.s32 %s74, 1
    %p78 = scmp.eq.s32.totalorder %s14, 1
    %p79 = scmp.ne.s32.totalorder %s74, %s76
    %p80 = scmp.eq.s32.totalorder %s14, 0
    %p81 = por %p79, %p80
    %p82 = scmp.ne.s32.totalorder %s74, %s76
    %p83 = scmp.eq.s32.totalorder %s19, 1
    %p84 = por %p82, %p83
    %p85 = scmp.ne.s32.totalorder %s76, %s77
    %p86 = scmp.eq.s32.totalorder %s19, 0
    %p87 = por %p85, %p86
    %p88 = scmp.ne.s32.totalorder %s76, %s77
    %p89 = scmp.eq.s32.totalorder %s20, 1
    %p90 = por %p88, %p89
    %p92 = scmp.ne.s32.totalorder %s77, %s91
    %p93 = scmp.eq.s32.totalorder %s20, 0
    %p94 = por %p92, %p93
    %s96 = sadd.s32 %s95, 1
    %p99 = scmp.eq.s32.totalorder %s14, 1
    %p100 = scmp.ne.s32.totalorder %s95, %s97
    %p101 = scmp.eq.s32.totalorder %s14, 0
    %p102 = por %p100, %p101
    %p103 = scmp.ne.s32.totalorder %s95, %s97
    %p104 = scmp.eq.s32.totalorder %s19, 1
    %p105 = por %p103, %p104
    %p106 = scmp.ne.s32.totalorder %s97, %s98
    %p107 = scmp.eq.s32.totalorder %s19, 0
    %p108 = por %p106, %p107
    %p109 = scmp.ne.s32.totalorder %s97, %s98
    %p110 = scmp.eq.s32.totalorder %s20, 1
    %p111 = por %p109, %p110
    %p113 = scmp.ne.s32.totalorder %s98, %s112
    %p114 = scmp.eq.s32.totalorder %s20, 0
    %p115 = por %p113, %p114
    %s117 = sadd.s32 %s116, 1
    %p120 = scmp.eq.s32.totalorder %s14, 1
    %p121 = scmp.ne.s32.totalorder %s116, %s118
    %p122 = scmp.eq.s32.totalorder %s14, 0
    %p123 = por %p121, %p122
    %p124 = scmp.ne.s32.totalorder %s116, %s118
    %p125 = scmp.eq.s32.totalorder %s19, 1
    %p126 = por %p124, %p125
    %p127 = scmp.ne.s32.totalorder %s118, %s119
    %p128 = scmp.eq.s32.totalorder %s19, 0
    %p129 = por %p127, %p128
    %p130 = scmp.ne.s32.totalorder %s118, %s119
    %p131 = scmp.eq.s32.totalorder %s20, 1
    %p132 = por %p130, %p131
    %p134 = scmp.ne.s32.totalorder %s119, %s133
    %p135 = scmp.eq.s32.totalorder %s20, 0
    %p136 = por %p134, %p135
    %s138 = sadd.s32 %s137, 1
    %p141 = scmp.eq.s32.totalorder %s14, 1
    %p142 = scmp.ne.s32.totalorder %s137, %s139
    %p143 = scmp.eq.s32.totalorder %s14, 0
    %p144 = por %p142, %p143
    %p145 = scmp.ne.s32.totalorder %s137, %s139
    %p146 = scmp.eq.s32.totalorder %s19, 1
    %p147 = por %p145, %p146
    %p148 = scmp.ne.s32.totalorder %s139, %s140
    %p149 = scmp.eq.s32.totalorder %s19, 0
    %p150 = por %p148, %p149
    %p151 = scmp.ne.s32.totalorder %s139, %s140
    %p152 = scmp.eq.s32.totalorder %s20, 1
    %p153 = por %p151, %p152
    %p155 = scmp.ne.s32.totalorder %s140, %s154
    %p156 = scmp.eq.s32.totalorder %s20, 0
    %p157 = por %p155, %p156
    %s159 = sadd.s32 %s158, 1
    %p162 = scmp.eq.s32.totalorder %s14, 1
    %p163 = scmp.ne.s32.totalorder %s158, %s160
    %p164 = scmp.eq.s32.totalorder %s14, 0
    %p165 = por %p163, %p164
    %p166 = scmp.ne.s32.totalorder %s158, %s160
    %p167 = scmp.eq.s32.totalorder %s19, 1
    %p168 = por %p166, %p167
    %p169 = scmp.ne.s32.totalorder %s160, %s161
    %p170 = scmp.eq.s32.totalorder %s19, 0
    %p171 = por %p169, %p170
    %p172 = scmp.ne.s32.totalorder %s160, %s161
    %p173 = scmp.eq.s32.totalorder %s20, 1
    %p174 = por %p172, %p173
    %p176 = scmp.ne.s32.totalorder %s161, %s175
    %p177 = scmp.eq.s32.totalorder %s20, 0
    %p178 = por %p176, %p177
    %s180 = sadd.s32 %s179, 1
    %p183 = scmp.eq.s32.totalorder %s14, 1
    %p184 = scmp.ne.s32.totalorder %s179, %s181
    %p185 = scmp.eq.s32.totalorder %s14, 0
    %p186 = por %p184, %p185
    %p187 = scmp.ne.s32.totalorder %s179, %s181
    %p188 = scmp.eq.s32.totalorder %s19, 1
    %p189 = por %p187, %p188
    %p190 = scmp.ne.s32.totalorder %s181, %s182
    %p191 = scmp.eq.s32.totalorder %s19, 0
    %p192 = por %p190, %p191
    %p193 = scmp.ne.s32.totalorder %s181, %s182
    %p194 = scmp.eq.s32.totalorder %s20, 1
    %p195 = por %p193, %p194
    %p197 = scmp.ne.s32.totalorder %s182, %s196
    %p198 = scmp.eq.s32.totalorder %s20, 0
    %p199 = por %p197, %p198
    %s200 = ssub.s32 %s14, %s21
    %p201 = scmp.eq.s32.totalorder %s200, 0
    %s203 = sadd.s32 %s202, 1
    %s204 = scalar_select %p201, %s202, %s203
    %p207 = pneg %p201
    %p208 = scmp.eq.s32.totalorder %s14, 1
    %p209 = por %p207, %p208
    %p210 = scmp.ne.s32.totalorder %s202, %s205
    %p211 = scmp.eq.s32.totalorder %s14, 0
    %p212 = por %p210, %p211
    %p213 = scmp.ne.s32.totalorder %s202, %s205
    %p214 = scmp.eq.s32.totalorder %s19, 1
    %p215 = por %p213, %p214
    %p216 = scmp.ne.s32.totalorder %s205, %s206
    %p217 = scmp.eq.s32.totalorder %s19, 0
    %p218 = por %p216, %p217
    %p219 = scmp.ne.s32.totalorder %s205, %s206
    %p220 = scmp.eq.s32.totalorder %s20, 1
    %p221 = por %p219, %p220
    %p223 = scmp.ne.s32.totalorder %s206, %s222
    %p224 = scmp.eq.s32.totalorder %s20, 0
    %p225 = por %p223, %p224
    %p226 = scmp.le.s32.totalorder 1, %s14
    %p227 = scmp.lt.s32.totalorder %s14, 3
    %p228 = pnand %p226, %p227
    %p229 = pneg %p228
    // Predicated region
    $region9: #{transformer_encoder_layer_no_ffn.1} parent=5 // pred_check
      _
    $region10: #{transformer_encoder_layer_no_ffn.1} parent=5 // pred_check_branch
      %231 = sbr.rel (%p228) target = $region12
    $region11: #{transformer_encoder_layer_no_ffn.1} parent=5 // pred_region
      %s232 = ssub.s32 %s14, 1
      // Predicated region
      $region13: #{transformer_encoder_layer_no_ffn.1} parent=11 // pred_check
        %p233 = pneg %p87
      $region14: #{transformer_encoder_layer_no_ffn.1} parent=11 // pred_check_branch
        %235 = sbr.rel (%p233) target = $region16
      $region15: #{transformer_encoder_layer_no_ffn.1} parent=11 // pred_region
        _
      $region16: #{transformer_encoder_layer_no_ffn.1} parent=11 // pred_fallthru
        _
      // Predicated region
      $region17: #{transformer_encoder_layer_no_ffn.1} parent=11 // pred_check
        %p236 = pneg %p108
      $region18: #{transformer_encoder_layer_no_ffn.1} parent=11 // pred_check_branch
        %238 = sbr.rel (%p236) target = $region20
      $region19: #{transformer_encoder_layer_no_ffn.1} parent=11 // pred_region
        _
      $region20: #{transformer_encoder_layer_no_ffn.1} parent=11 // pred_fallthru
        _
      // Predicated region
      $region21: #{transformer_encoder_layer_no_ffn.1} parent=11 // pred_check
        %p239 = pneg %p129
      $region22: #{transformer_encoder_layer_no_ffn.1} parent=11 // pred_check_branch
        %241 = sbr.rel (%p239) target = $region24
      $region23: #{transformer_encoder_layer_no_ffn.1} parent=11 // pred_region
        _
      $region24: #{transformer_encoder_layer_no_ffn.1} parent=11 // pred_fallthru
        _
      // Predicated region
      $region25: #{transformer_encoder_layer_no_ffn.1} parent=11 // pred_check
        %p242 = pneg %p150
      $region26: #{transformer_encoder_layer_no_ffn.1} parent=11 // pred_check_branch
        %244 = sbr.rel (%p242) target = $region28
      $region27: #{transformer_encoder_layer_no_ffn.1} parent=11 // pred_region
        _
      $region28: #{transformer_encoder_layer_no_ffn.1} parent=11 // pred_fallthru
        _
      // Predicated region
      $region29: #{transformer_encoder_layer_no_ffn.1} parent=11 // pred_check
        %p245 = pneg %p171
      $region30: #{transformer_encoder_layer_no_ffn.1} parent=11 // pred_check_branch
        %247 = sbr.rel (%p245) target = $region32
      $region31: #{transformer_encoder_layer_no_ffn.1} parent=11 // pred_region
        _
      $region32: #{transformer_encoder_layer_no_ffn.1} parent=11 // pred_fallthru
        _
      // Predicated region
      $region33: #{transformer_encoder_layer_no_ffn.1} parent=11 // pred_check
        %p248 = pneg %p192
      $region34: #{transformer_encoder_layer_no_ffn.1} parent=11 // pred_check_branch
        %250 = sbr.rel (%p248) target = $region36
      $region35: #{transformer_encoder_layer_no_ffn.1} parent=11 // pred_region
        _
      $region36: #{transformer_encoder_layer_no_ffn.1} parent=11 // pred_fallthru
        _
    $region12: #{transformer_encoder_layer_no_ffn.1} parent=5 // pred_fallthru
      _
    %p251 = scmp.lt.s32.totalorder %s14, 2
    // Predicated region
    $region37: #{transformer_encoder_layer_no_ffn.1} parent=5 // pred_check
      %p252 = pneg %p251
    $region38: #{transformer_encoder_layer_no_ffn.1} parent=5 // pred_check_branch
      %254 = sbr.rel (%p252) target = $region40
    $region39: #{transformer_encoder_layer_no_ffn.1} parent=5 // pred_region
      // Predicated region
      $region41: #{transformer_encoder_layer_no_ffn.1} parent=39 // pred_check
        %p255 = pneg %p34
      $region42: #{transformer_encoder_layer_no_ffn.1} parent=39 // pred_check_branch
        %257 = sbr.rel (%p255) target = $region44
      $region43: #{transformer_encoder_layer_no_ffn.1} parent=39 // pred_region
        %p258 = scmp.lt.s32.totalorder %s14, 1
        %s259 = scalar_select %p258, %s14, 1
        %s260 = smul.addr %s259, 8
        %s261 = scalar_lea.vmem %s0, %s260
      $region44: #{transformer_encoder_layer_no_ffn.1} parent=39 // pred_fallthru
        _
      // Predicated region
      $region45: #{transformer_encoder_layer_no_ffn.1} parent=39 // pred_check
        %p262 = pneg %p60
      $region46: #{transformer_encoder_layer_no_ffn.1} parent=39 // pred_check_branch
        %264 = sbr.rel (%p262) target = $region48
      $region47: #{transformer_encoder_layer_no_ffn.1} parent=39 // pred_region
        %p265 = scmp.lt.s32.totalorder %s14, 1
        %s266 = scalar_select %p265, %s14, 1
        %s267 = scalar_lea.vmem %s1, %s266
      $region48: #{transformer_encoder_layer_no_ffn.1} parent=39 // pred_fallthru
        _
    $region40: #{transformer_encoder_layer_no_ffn.1} parent=5 // pred_fallthru
      _
    %p268 = scmp.le.s32.totalorder 1, %s14
    %p269 = scmp.lt.s32.totalorder %s14, 3
    %p270 = pnand %p268, %p269
    %p271 = pneg %p270
    // Predicated region
    $region49: #{transformer_encoder_layer_no_ffn.1} parent=5 // pred_check
      _
    $region50: #{transformer_encoder_layer_no_ffn.1} parent=5 // pred_check_branch
      %273 = sbr.rel (%p270) target = $region52
    $region51: #{transformer_encoder_layer_no_ffn.1} parent=5 // pred_region
      %s274 = ssub.s32 %s14, 1
      %p275 = scmp.lt.s32.totalorder %s19, 1
      %s276 = scalar_select %p275, %s19, 1
      %s277 = smul.addr %s276, 8
      %s278 = scalar_lea.vmem %s0, %s277
      %p279 = pneg %p40
      %p280 = pneg %p37
      %p281 = scmp.lt.s32.totalorder %s19, 1
      %s282 = scalar_select %p281, %s19, 1
      %s283 = scalar_lea.vmem %s1, %s282
      %p284 = pneg %p66
      %p285 = pneg %p63
      %p286 = pneg %p87
      %p287 = pneg %p84
      %p288 = pneg %p108
      %p289 = pneg %p105
      %p290 = pneg %p129
      %p291 = pneg %p126
      %p292 = pneg %p150
      %p293 = pneg %p147
      %p294 = pneg %p171
      %p295 = pneg %p168
      %p296 = pneg %p192
      %p297 = pneg %p189
      %p298 = pneg %p218
      %p299 = pneg %p215
      %p300 = scmp.lt.s32.totalorder %s19, 1
      %s301 = scalar_select %p300, %s19, 1
      %s302 = smul.addr %s301, 8
      %s303 = scalar_lea.vmem %s8, %s302
      %p304 = scmp.lt.s32.totalorder %s19, 1
      %s305 = scalar_select %p304, %s19, 1
      %s306 = smul.addr %s305, 8
      %s307 = scalar_lea.vmem %s0, %s306
      %p308 = scmp.lt.s32.totalorder %s19, 1
      %s309 = scalar_select %p308, %s19, 1
      %s310 = scalar_lea.vmem %s1, %s309
      %p311 = scmp.lt.s32.totalorder %s19, 1
      %s312 = scalar_select %p311, %s19, 1
      %s313 = smul.addr %s312, 8
      %s314 = scalar_lea.vmem %s8, %s313
      %v316 = vld [vmem:[%s307] sm:$0xff]
      %v317 = vpack.c.bf16 %v316, %v316
      %v318 = vld [vmem:[%s2] sm:$0xff]
      %v319 = vld [vmem:[%s2 + $0x8] sm:$0xf]
      %v320 = vld [vmem:[%s2 + $0xc] sm:$0xff]
      %v321 = vld [vmem:[%s2 + $0x14] sm:$0xf]
      %v322 = vld [vmem:[%s2 + $0x18] sm:$0xff]
      %v323 = vld [vmem:[%s2 + $0x20] sm:$0xf]
      %v324 = vld [vmem:[%s2 + $0x24] sm:$0xff]
      %v325 = vld [vmem:[%s2 + $0x2c] sm:$0xf]
      %v326 = vld [vmem:[%s2 + $0x30] sm:$0xff]
      %v327 = vld [vmem:[%s2 + $0x38] sm:$0xf]
      %v328 = vld [vmem:[%s2 + $0x3c] sm:$0xff]
      %v329 = vld [vmem:[%s2 + $0x44] sm:$0xf]
      %v330 = vld [vmem:[%s2 + $0x48] sm:$0xff]
      %v331 = vld [vmem:[%s2 + $0x50] sm:$0xf]
      %v332 = vld [vmem:[%s2 + $0x54] sm:$0xff]
      %v333 = vld [vmem:[%s2 + $0x5c] sm:$0xf]
      %v334 = vld [vmem:[%s2 + $0x60] sm:$0xff]
      %v335 = vld [vmem:[%s2 + $0x68] sm:$0xf]
      %v336 = vld [vmem:[%s2 + $0x6c] sm:$0xff]
      %v337 = vld [vmem:[%s2 + $0x74] sm:$0xf]
      %v338 = vld [vmem:[%s2 + $0x78] sm:$0xff]
      %v339 = vld [vmem:[%s2 + $0x80] sm:$0xf]
      %v340 = vld [vmem:[%s2 + $0x84] sm:$0xff]
      %v341 = vld [vmem:[%s2 + $0x8c] sm:$0xf]
      %v342 = vld [vmem:[%s2 + $0x90] sm:$0xff]
      %v343 = vld [vmem:[%s2 + $0x98] sm:$0xf]
      %v344 = vld [vmem:[%s2 + $0x9c] sm:$0xff]
      %v345 = vld [vmem:[%s2 + $0xa4] sm:$0xf]
      %v346 = vld [vmem:[%s2 + $0xa8] sm:$0xff]
      %v347 = vld [vmem:[%s2 + $0xb0] sm:$0xf]
      %v348 = vld [vmem:[%s2 + $0xb4] sm:$0xff]
      %v349 = vld [vmem:[%s2 + $0xbc] sm:$0xf]
      %v350 = vld [vmem:[%s3] sm:$0x7]
      %v352 = vlaneseq
      %v353 = vshrl.u32 %v352, 7
      %v354 = vsub.s32 0, %v353
      %v355 = vrot.slane %v350, %v354
      %v356 = vlaneseq
      %v357 = vshrl.u32 %v356, 7
      %v358 = vsub.s32 1, %v357
      %v359 = vrot.slane %v350, %v358
      %v360 = vlaneseq
      %v361 = vshrl.u32 %v360, 7
      %v362 = vsub.s32 2, %v361
      %v363 = vrot.slane %v350, %v362
      %v399 = vunpack.c.l.b16 %v318
      %v400 = vunpack.c.h.b16 %v318
      %v401 = vunpack.c.l.b16 %v319
      %v402 = vunpack.c.l.b16 %v320
      %v403 = vunpack.c.h.b16 %v320
      %v404 = vunpack.c.l.b16 %v321
      %v405 = vunpack.c.l.b16 %v322
      %v406 = vunpack.c.h.b16 %v322
      %v407 = vunpack.c.l.b16 %v323
      %v408 = vunpack.c.l.b16 %v324
      %v409 = vunpack.c.h.b16 %v324
      %v410 = vunpack.c.l.b16 %v325
      %v411 = vunpack.c.l.b16 %v326
      %v412 = vunpack.c.h.b16 %v326
      %v413 = vunpack.c.l.b16 %v327
      %v414 = vunpack.c.l.b16 %v328
      %v415 = vunpack.c.h.b16 %v328
      %v416 = vunpack.c.l.b16 %v329
      %v417 = vunpack.c.l.b16 %v330
      %v418 = vunpack.c.h.b16 %v330
      %v419 = vunpack.c.l.b16 %v331
      %v420 = vunpack.c.l.b16 %v332
      %v421 = vunpack.c.h.b16 %v332
      %v422 = vunpack.c.l.b16 %v333
      %v423 = vunpack.c.l.b16 %v334
      %v424 = vunpack.c.h.b16 %v334
      %v425 = vunpack.c.l.b16 %v335
      %v426 = vunpack.c.l.b16 %v336
      %v427 = vunpack.c.h.b16 %v336
      %v428 = vunpack.c.l.b16 %v337
      %v429 = vunpack.c.l.b16 %v338
      %v430 = vunpack.c.h.b16 %v338
      %v431 = vunpack.c.l.b16 %v339
      %v432 = vunpack.c.l.b16 %v340
      %v433 = vunpack.c.h.b16 %v340
      %v434 = vunpack.c.l.b16 %v341
      %v435 = vunpack.c.l.b16 %v342
      %v436 = vunpack.c.h.b16 %v342
      %v437 = vunpack.c.l.b16 %v343
      %v438 = vunpack.c.l.b16 %v344
      %v439 = vunpack.c.h.b16 %v344
      %v440 = vunpack.c.l.b16 %v345
      %v441 = vunpack.c.l.b16 %v346
      %v442 = vunpack.c.h.b16 %v346
      %v443 = vunpack.c.l.b16 %v347
      %v444 = vunpack.c.l.b16 %v348
      %v445 = vunpack.c.h.b16 %v348
      %v446 = vunpack.c.l.b16 %v349
      %v447 = vpack.c.b16 %v402, %v399
      %v448 = vpack.c.b16 %v403, %v400
      %v449 = vpack.c.b16 %v404, %v401
      %v450 = vpack.c.b16 %v408, %v405
      %v451 = vpack.c.b16 %v409, %v406
      %v452 = vpack.c.b16 %v410, %v407
      %v453 = vpack.c.b16 %v414, %v411
      %v454 = vpack.c.b16 %v415, %v412
      %v455 = vpack.c.b16 %v416, %v413
      %v456 = vpack.c.b16 %v420, %v417
      %v457 = vpack.c.b16 %v421, %v418
      %v458 = vpack.c.b16 %v422, %v419
      %v459 = vpack.c.b16 %v426, %v423
      %v460 = vpack.c.b16 %v427, %v424
      %v461 = vpack.c.b16 %v428, %v425
      %v462 = vpack.c.b16 %v432, %v429
      %v463 = vpack.c.b16 %v433, %v430
      %v464 = vpack.c.b16 %v434, %v431
      %v465 = vpack.c.b16 %v438, %v435
      %v466 = vpack.c.b16 %v439, %v436
      %v467 = vpack.c.b16 %v440, %v437
      %v468 = vpack.c.b16 %v444, %v441
      %v469 = vpack.c.b16 %v445, %v442
      %v470 = vpack.c.b16 %v446, %v443
      %495 = vmatprep.subr.bf16.mxu0 %v448
      %496 = vmatpush1.bf16.msra.mxu0 %v447
      %497 = vmatprep.subr.bf16.mxu0 %v451
      %498 = vmatpush1.bf16.msra.mxu0 %v450
      %499 = vmatprep.subr.bf16.mxu0 %v454
      %500 = vmatpush1.bf16.msra.mxu0 %v453
      %501 = vmatprep.subr.bf16.mxu0 %v457
      %502 = vmatpush1.bf16.msra.mxu0 %v456
      %503 = vmatprep.subr.bf16.mxu0 %v460
      %504 = vmatpush1.bf16.msra.mxu0 %v459
      %505 = vmatprep.subr.bf16.mxu0 %v463
      %506 = vmatpush1.bf16.msra.mxu0 %v462
      %507 = vmatprep.subr.bf16.mxu0 %v466
      %508 = vmatpush1.bf16.msra.mxu0 %v465
      %509 = vmatprep.subr.bf16.mxu0 %v469
      %510 = vmatpush1.bf16.msra.mxu0 %v468
      %511 = vmatprep.subr.bf16.mxu0 0
      %512 = vmatpush1.bf16.msra.mxu0 0
      %513 = vmatprep.subr.bf16.mxu0 0
      %514 = vmatpush1.bf16.msra.mxu0 0
      %515 = vmatprep.subr.bf16.mxu0 0
      %516 = vmatpush1.bf16.msra.mxu0 0
      %517 = vmatprep.subr.bf16.mxu0 0
      %518 = vmatpush1.bf16.msra.mxu0 0
      %519 = vmatprep.subr.bf16.mxu0 0
      %520 = vmatpush1.bf16.msra.mxu0 0
      %521 = vmatprep.subr.bf16.mxu0 0
      %522 = vmatpush1.bf16.msra.mxu0 0
      %523 = vmatprep.subr.bf16.mxu0 0
      %524 = vmatpush1.bf16.msra.mxu0 0
      %525 = vmatprep.subr.bf16.mxu0 0
      %526 = vmatpush1.bf16.msra.mxu0 0
      %527 = vmatprep.mubr.bf16.mxu0 0
      %528 = vmatmul.mubr.bf16.gmra.mrb[0].mxu0 %v317
      %v529 = vpop.f32.mrb[0].mxu0
      %v530 = vadd.f32 %v355, %v529
      %v531 = vpop.f32.mrb[0].mxu0
      %v532 = vadd.f32 %v359, %v531
      %v533 = vpop.f32.mrb[0].mxu0
      %v534 = vpop.f32.mrb[0].mxu0
      %535 = vdwg.mxu0
      %536 = vmatprep.subr.bf16.mxu0 0
      %537 = vmatpush1.bf16.msra.mxu0 %v449
      %538 = vmatprep.subr.bf16.mxu0 0
      %539 = vmatpush1.bf16.msra.mxu0 %v452
      %540 = vmatprep.subr.bf16.mxu0 0
      %541 = vmatpush1.bf16.msra.mxu0 %v455
      %542 = vmatprep.subr.bf16.mxu0 0
      %543 = vmatpush1.bf16.msra.mxu0 %v458
      %544 = vmatprep.subr.bf16.mxu0 0
      %545 = vmatpush1.bf16.msra.mxu0 %v461
      %546 = vmatprep.subr.bf16.mxu0 0
      %547 = vmatpush1.bf16.msra.mxu0 %v464
      %548 = vmatprep.subr.bf16.mxu0 0
      %549 = vmatpush1.bf16.msra.mxu0 %v467
      %550 = vmatprep.subr.bf16.mxu0 0
      %551 = vmatpush1.bf16.msra.mxu0 %v470
      %552 = vmatprep.subr.bf16.mxu0 0
      %553 = vmatpush1.bf16.msra.mxu0 0
      %554 = vmatprep.subr.bf16.mxu0 0
      %555 = vmatpush1.bf16.msra.mxu0 0
      %556 = vmatprep.subr.bf16.mxu0 0
      %557 = vmatpush1.bf16.msra.mxu0 0
      %558 = vmatprep.subr.bf16.mxu0 0
      %559 = vmatpush1.bf16.msra.mxu0 0
      %560 = vmatprep.subr.bf16.mxu0 0
      %561 = vmatpush1.bf16.msra.mxu0 0
      %562 = vmatprep.subr.bf16.mxu0 0
      %563 = vmatpush1.bf16.msra.mxu0 0
      %564 = vmatprep.subr.bf16.mxu0 0
      %565 = vmatpush1.bf16.msra.mxu0 0
      %566 = vmatprep.subr.bf16.mxu0 0
      %567 = vmatpush1.bf16.msra.mxu0 0
      %568 = vmatprep.mubr.bf16.mxu0 0
      %569 = vmatmul.mubr.bf16.gmra.mrb[0].mxu0 %v317
      %v570 = vpop.f32.mrb[0].mxu0
      %v571 = vadd.f32 %v363, %v570
      %v572 = vpop.f32.mrb[0].mxu0
      %v573 = vpop.f32.mrb[0].mxu0
      %v574 = vpop.f32.mrb[0].mxu0
      %575 = vdwg.mxu0
      %v576 = vpack.c.bf16 %v530, %v530
      %v577 = vpack.c.bf16 %v532, %v532
      %v578 = vpack.c.bf16 %v571, %v571
      %v582 = vunpack.c.l.b16 %v576
      %v583 = vunpack.c.l.b16 %v577
      %v584 = vunpack.c.l.b16 %v578
      %v585 = vpack.c.b16 %v583, %v582
      %v586 = vpack.c.b16 %v584, %v584
      %589 = vst [vmem:[#allocation2] sm:$0xff] %v585
      %590 = vst [vmem:[#allocation2 + $0x8] sm:$0xf] %v586
      %v591 = vld [vmem:[%s310] sm:$0x1]
      %v593 = vlaneseq
      %v594 = vshrl.u32 %v593, 7
      %v595 = vsub.s32 0, %v594
      %v596 = vrot.slane %v591, %v595
      %v598 = vld [vmem:[#allocation2] sm:$0xf]
      %v599 = vld [vmem:[#allocation2 + $0x4] sm:$0xf]
      %v600 = vld [vmem:[#allocation2 + $0x8] sm:$0xf]
      %vm601 = vcmask 261120
      %v603 = vsel %vm601, %v598, 0
      %v606 = vsel %vm601, %v599, 0
      %608 = vmatprep.subr.bf16.mxu0 0
      %609 = vmatpush1.bf16.xpose.msra.mxu0 %v606
      %610 = vmatprep.subr.bf16.mxu0 0
      %611 = vmatpush1.bf16.xpose.msra.mxu0 0
      %612 = vmatprep.subr.bf16.mxu0 0
      %613 = vmatpush1.bf16.xpose.msra.mxu0 0
      %614 = vmatprep.subr.bf16.mxu0 0
      %615 = vmatpush1.bf16.xpose.msra.mxu0 0
      %616 = vmatprep.subr.bf16.mxu0 0
      %617 = vmatpush1.bf16.xpose.msra.mxu0 0
      %618 = vmatprep.subr.bf16.mxu0 0
      %619 = vmatpush1.bf16.xpose.msra.mxu0 0
      %620 = vmatprep.subr.bf16.mxu0 0
      %621 = vmatpush1.bf16.xpose.msra.mxu0 0
      %622 = vmatprep.subr.bf16.mxu0 0
      %623 = vmatpush1.bf16.xpose.msra.mxu0 0
      %624 = vmatprep.subr.bf16.mxu0 0
      %625 = vmatpush1.bf16.xpose.msra.mxu0 0
      %626 = vmatprep.subr.bf16.mxu0 0
      %627 = vmatpush1.bf16.xpose.msra.mxu0 0
      %628 = vmatprep.subr.bf16.mxu0 0
      %629 = vmatpush1.bf16.xpose.msra.mxu0 0
      %630 = vmatprep.subr.bf16.mxu0 0
      %631 = vmatpush1.bf16.xpose.msra.mxu0 0
      %632 = vmatprep.subr.bf16.mxu0 0
      %633 = vmatpush1.bf16.xpose.msra.mxu0 0
      %634 = vmatprep.subr.bf16.mxu0 0
      %635 = vmatpush1.bf16.xpose.msra.mxu0 0
      %636 = vmatprep.subr.bf16.mxu0 0
      %637 = vmatpush1.bf16.xpose.msra.mxu0 0
      %638 = vmatprep.subr.bf16.mxu0 0
      %639 = vmatpush1.bf16.xpose.msra.mxu0 0
      %640 = vmatprep.mubr.bf16.mxu0 0
      %641 = vmatmul.mubr.bf16.gmra.mrb[0].mxu0 %v603
      %v642 = vpop.f32.mrb[0].mxu0
      %v643 = vadd.f32 %v596, %v642
      %v644 = vpop.f32.mrb[0].mxu0
      %v645 = vpop.f32.mrb[0].mxu0
      %v646 = vpop.f32.mrb[0].mxu0
      %647 = vdwg.mxu0
      %vm648 = vcmask 64512
      %v649 = vsel %vm648, %v643, -inf
      %650 = vmax.xlane.f32.xlu0 %v649
      %v651 = vpop.xlane.xlu0 %650
      %v652 = vsub.f32 %v643, %v651
      %v653 = vmul.f32 %v652, 1.442695
      %v654 = vpow.pop %v653
      %v655 = vsel %vm648, %v654, 0.0
      %656 = vadd.xlane.f32.xlu0 %v655
      %v657 = vpop.xlane.xlu0 %656
      %v658 = vrcp.pop %v657
      %v659 = vmul.f32 %v654, %v658
      %v660 = vpack.c.bf16 %v659, %v659
      %v662 = vsel %vm648, %v660, 0
      %vm664 = vcmask 1043456
      %v666 = vsel %vm664, %v600, 0
      %668 = vmatprep.subr.bf16.mxu0 0
      %669 = vmatpush1.bf16.msra.mxu0 %v666
      %670 = vmatprep.subr.bf16.mxu0 0
      %671 = vmatpush1.bf16.msra.mxu0 0
      %672 = vmatprep.subr.bf16.mxu0 0
      %673 = vmatpush1.bf16.msra.mxu0 0
      %674 = vmatprep.subr.bf16.mxu0 0
      %675 = vmatpush1.bf16.msra.mxu0 0
      %676 = vmatprep.subr.bf16.mxu0 0
      %677 = vmatpush1.bf16.msra.mxu0 0
      %678 = vmatprep.subr.bf16.mxu0 0
      %679 = vmatpush1.bf16.msra.mxu0 0
      %680 = vmatprep.subr.bf16.mxu0 0
      %681 = vmatpush1.bf16.msra.mxu0 0
      %682 = vmatprep.subr.bf16.mxu0 0
      %683 = vmatpush1.bf16.msra.mxu0 0
      %684 = vmatprep.subr.bf16.mxu0 0
      %685 = vmatpush1.bf16.msra.mxu0 0
      %686 = vmatprep.subr.bf16.mxu0 0
      %687 = vmatpush1.bf16.msra.mxu0 0
      %688 = vmatprep.subr.bf16.mxu0 0
      %689 = vmatpush1.bf16.msra.mxu0 0
      %690 = vmatprep.subr.bf16.mxu0 0
      %691 = vmatpush1.bf16.msra.mxu0 0
      %692 = vmatprep.subr.bf16.mxu0 0
      %693 = vmatpush1.bf16.msra.mxu0 0
      %694 = vmatprep.subr.bf16.mxu0 0
      %695 = vmatpush1.bf16.msra.mxu0 0
      %696 = vmatprep.subr.bf16.mxu0 0
      %697 = vmatpush1.bf16.msra.mxu0 0
      %698 = vmatprep.subr.bf16.mxu0 0
      %699 = vmatpush1.bf16.msra.mxu0 0
      %700 = vmatprep.mubr.bf16.mxu0 0
      %701 = vmatmul.mubr.bf16.gmra.mrb[0].mxu0 %v662
      %v702 = vpop.f32.mrb[0].mxu0
      %v703 = vadd.f32 0.0, %v702
      %v704 = vpop.f32.mrb[0].mxu0
      %v705 = vpop.f32.mrb[0].mxu0
      %v706 = vpop.f32.mrb[0].mxu0
      %707 = vdwg.mxu0
      %708 = vst.msk [vmem:[#allocation3] sm:$0xff] %vm601, %v703
      %v709 = vld [vmem:[#allocation2] sm:$0xf]
      %v710 = vld [vmem:[#allocation2 + $0x4] sm:$0xf]
      %v711 = vld [vmem:[#allocation2 + $0x8] sm:$0xf]
      %v713 = vunpack.c.l.b16 %v709
      %v714 = vpack.c.b16 %v713, %v713
      %715 = vrot.lane.b32.xlu0 %v714, 96
      %v716 = vpop.permute.xlu0 %715
      %v718 = vunpack.c.l.b16 %v710
      %v719 = vpack.c.b16 %v718, %v718
      %720 = vrot.lane.b32.xlu0 %v719, 96
      %v721 = vpop.permute.xlu0 %720
      %v723 = vsel %vm601, %v716, 0
      %v726 = vsel %vm601, %v721, 0
      %728 = vmatprep.subr.bf16.mxu0 0
      %729 = vmatpush1.bf16.xpose.msra.mxu0 %v726
      %730 = vmatprep.subr.bf16.mxu0 0
      %731 = vmatpush1.bf16.xpose.msra.mxu0 0
      %732 = vmatprep.subr.bf16.mxu0 0
      %733 = vmatpush1.bf16.xpose.msra.mxu0 0
      %734 = vmatprep.subr.bf16.mxu0 0
      %735 = vmatpush1.bf16.xpose.msra.mxu0 0
      %736 = vmatprep.subr.bf16.mxu0 0
      %737 = vmatpush1.bf16.xpose.msra.mxu0 0
      %738 = vmatprep.subr.bf16.mxu0 0
      %739 = vmatpush1.bf16.xpose.msra.mxu0 0
      %740 = vmatprep.subr.bf16.mxu0 0
      %741 = vmatpush1.bf16.xpose.msra.mxu0 0
      %742 = vmatprep.subr.bf16.mxu0 0
      %743 = vmatpush1.bf16.xpose.msra.mxu0 0
      %744 = vmatprep.subr.bf16.mxu0 0
      %745 = vmatpush1.bf16.xpose.msra.mxu0 0
      %746 = vmatprep.subr.bf16.mxu0 0
      %747 = vmatpush1.bf16.xpose.msra.mxu0 0
      %748 = vmatprep.subr.bf16.mxu0 0
      %749 = vmatpush1.bf16.xpose.msra.mxu0 0
      %750 = vmatprep.subr.bf16.mxu0 0
      %751 = vmatpush1.bf16.xpose.msra.mxu0 0
      %752 = vmatprep.subr.bf16.mxu0 0
      %753 = vmatpush1.bf16.xpose.msra.mxu0 0
      %754 = vmatprep.subr.bf16.mxu0 0
      %755 = vmatpush1.bf16.xpose.msra.mxu0 0
      %756 = vmatprep.subr.bf16.mxu0 0
      %757 = vmatpush1.bf16.xpose.msra.mxu0 0
      %758 = vmatprep.subr.bf16.mxu0 0
      %759 = vmatpush1.bf16.xpose.msra.mxu0 0
      %760 = vmatprep.mubr.bf16.mxu0 0
      %761 = vmatmul.mubr.bf16.gmra.mrb[0].mxu0 %v723
      %v762 = vpop.f32.mrb[0].mxu0
      %v763 = vadd.f32 %v596, %v762
      %v764 = vpop.f32.mrb[0].mxu0
      %v765 = vpop.f32.mrb[0].mxu0
      %v766 = vpop.f32.mrb[0].mxu0
      %767 = vdwg.mxu0
      %v768 = vsel %vm648, %v763, -inf
      %769 = vmax.xlane.f32.xlu0 %v768
      %v770 = vpop.xlane.xlu0 %769
      %v771 = vsub.f32 %v763, %v770
      %v772 = vmul.f32 %v771, 1.442695
      %v773 = vpow.pop %v772
      %v774 = vsel %vm648, %v773, 0.0
      %775 = vadd.xlane.f32.xlu0 %v774
      %v776 = vpop.xlane.xlu0 %775
      %v777 = vrcp.pop %v776
      %v778 = vmul.f32 %v773, %v777
      %v779 = vpack.c.bf16 %v778, %v778
      %v781 = vunpack.c.l.b16 %v711
      %v782 = vpack.c.b16 %v781, %v781
      %783 = vrot.lane.b32.xlu0 %v782, 96
      %v784 = vpop.permute.xlu0 %783
      %v786 = vsel %vm648, %v779, 0
      %v789 = vsel %vm664, %v784, 0
      %791 = vmatprep.subr.bf16.mxu0 0
      %792 = vmatpush1.bf16.msra.mxu0 %v789
      %793 = vmatprep.subr.bf16.mxu0 0
      %794 = vmatpush1.bf16.msra.mxu0 0
      %795 = vmatprep.subr.bf16.mxu0 0
      %796 = vmatpush1.bf16.msra.mxu0 0
      %797 = vmatprep.subr.bf16.mxu0 0
      %798 = vmatpush1.bf16.msra.mxu0 0
      %799 = vmatprep.subr.bf16.mxu0 0
      %800 = vmatpush1.bf16.msra.mxu0 0
      %801 = vmatprep.subr.bf16.mxu0 0
      %802 = vmatpush1.bf16.msra.mxu0 0
      %803 = vmatprep.subr.bf16.mxu0 0
      %804 = vmatpush1.bf16.msra.mxu0 0
      %805 = vmatprep.subr.bf16.mxu0 0
      %806 = vmatpush1.bf16.msra.mxu0 0
      %807 = vmatprep.subr.bf16.mxu0 0
      %808 = vmatpush1.bf16.msra.mxu0 0
      %809 = vmatprep.subr.bf16.mxu0 0
      %810 = vmatpush1.bf16.msra.mxu0 0
      %811 = vmatprep.subr.bf16.mxu0 0
      %812 = vmatpush1.bf16.msra.mxu0 0
      %813 = vmatprep.subr.bf16.mxu0 0
      %814 = vmatpush1.bf16.msra.mxu0 0
      %815 = vmatprep.subr.bf16.mxu0 0
      %816 = vmatpush1.bf16.msra.mxu0 0
      %817 = vmatprep.subr.bf16.mxu0 0
      %818 = vmatpush1.bf16.msra.mxu0 0
      %819 = vmatprep.subr.bf16.mxu0 0
      %820 = vmatpush1.bf16.msra.mxu0 0
      %821 = vmatprep.subr.bf16.mxu0 0
      %822 = vmatpush1.bf16.msra.mxu0 0
      %823 = vmatprep.mubr.bf16.mxu0 0
      %824 = vmatmul.mubr.bf16.gmra.mrb[0].mxu0 %v786
      %v825 = vpop.f32.mrb[0].mxu0
      %v826 = vadd.f32 0.0, %v825
      %v827 = vpop.f32.mrb[0].mxu0
      %v828 = vpop.f32.mrb[0].mxu0
      %v829 = vpop.f32.mrb[0].mxu0
      %830 = vdwg.mxu0
      %832 = vrot.lane.b32.xlu0 %v826, 32
      %v833 = vpop.permute.xlu0 %832
      %vm835 = vcmask 523520
      %836 = vst.msk [vmem:[#allocation3] sm:$0xff] %vm835, %v833
      %v837 = vld [vmem:[#allocation2] sm:$0xf]
      %v838 = vld [vmem:[#allocation2 + $0x4] sm:$0xf]
      %v839 = vld [vmem:[#allocation2 + $0x8] sm:$0xf]
      %v841 = vunpack.c.l.b16 %v837
      %v842 = vpack.c.b16 %v841, %v841
      %843 = vrot.lane.b32.xlu0 %v842, 64
      %v844 = vpop.permute.xlu0 %843
      %v846 = vunpack.c.l.b16 %v838
      %v847 = vpack.c.b16 %v846, %v846
      %848 = vrot.lane.b32.xlu0 %v847, 64
      %v849 = vpop.permute.xlu0 %848
      %v851 = vsel %vm601, %v844, 0
      %v854 = vsel %vm601, %v849, 0
      %856 = vmatprep.subr.bf16.mxu0 0
      %857 = vmatpush1.bf16.xpose.msra.mxu0 %v854
      %858 = vmatprep.subr.bf16.mxu0 0
      %859 = vmatpush1.bf16.xpose.msra.mxu0 0
      %860 = vmatprep.subr.bf16.mxu0 0
      %861 = vmatpush1.bf16.xpose.msra.mxu0 0
      %862 = vmatprep.subr.bf16.mxu0 0
      %863 = vmatpush1.bf16.xpose.msra.mxu0 0
      %864 = vmatprep.subr.bf16.mxu0 0
      %865 = vmatpush1.bf16.xpose.msra.mxu0 0
      %866 = vmatprep.subr.bf16.mxu0 0
      %867 = vmatpush1.bf16.xpose.msra.mxu0 0
      %868 = vmatprep.subr.bf16.mxu0 0
      %869 = vmatpush1.bf16.xpose.msra.mxu0 0
      %870 = vmatprep.subr.bf16.mxu0 0
      %871 = vmatpush1.bf16.xpose.msra.mxu0 0
      %872 = vmatprep.subr.bf16.mxu0 0
      %873 = vmatpush1.bf16.xpose.msra.mxu0 0
      %874 = vmatprep.subr.bf16.mxu0 0
      %875 = vmatpush1.bf16.xpose.msra.mxu0 0
      %876 = vmatprep.subr.bf16.mxu0 0
      %877 = vmatpush1.bf16.xpose.msra.mxu0 0
      %878 = vmatprep.subr.bf16.mxu0 0
      %879 = vmatpush1.bf16.xpose.msra.mxu0 0
      %880 = vmatprep.subr.bf16.mxu0 0
      %881 = vmatpush1.bf16.xpose.msra.mxu0 0
      %882 = vmatprep.subr.bf16.mxu0 0
      %883 = vmatpush1.bf16.xpose.msra.mxu0 0
      %884 = vmatprep.subr.bf16.mxu0 0
      %885 = vmatpush1.bf16.xpose.msra.mxu0 0
      %886 = vmatprep.subr.bf16.mxu0 0
      %887 = vmatpush1.bf16.xpose.msra.mxu0 0
      %888 = vmatprep.mubr.bf16.mxu0 0
      %889 = vmatmul.mubr.bf16.gmra.mrb[0].mxu0 %v851
      %v890 = vpop.f32.mrb[0].mxu0
      %v891 = vadd.f32 %v596, %v890
      %v892 = vpop.f32.mrb[0].mxu0
      %v893 = vpop.f32.mrb[0].mxu0
      %v894 = vpop.f32.mrb[0].mxu0
      %895 = vdwg.mxu0
      %v896 = vsel %vm648, %v891, -inf
      %897 = vmax.xlane.f32.xlu0 %v896
      %v898 = vpop.xlane.xlu0 %897
      %v899 = vsub.f32 %v891, %v898
      %v900 = vmul.f32 %v899, 1.442695
      %v901 = vpow.pop %v900
      %v902 = vsel %vm648, %v901, 0.0
      %903 = vadd.xlane.f32.xlu0 %v902
      %v904 = vpop.xlane.xlu0 %903
      %v905 = vrcp.pop %v904
      %v906 = vmul.f32 %v901, %v905
      %v907 = vpack.c.bf16 %v906, %v906
      %v909 = vunpack.c.l.b16 %v839
      %v910 = vpack.c.b16 %v909, %v909
      %911 = vrot.lane.b32.xlu0 %v910, 64
      %v912 = vpop.permute.xlu0 %911
      %v914 = vsel %vm648, %v907, 0
      %v917 = vsel %vm664, %v912, 0
      %919 = vmatprep.subr.bf16.mxu0 0
      %920 = vmatpush1.bf16.msra.mxu0 %v917
      %921 = vmatprep.subr.bf16.mxu0 0
      %922 = vmatpush1.bf16.msra.mxu0 0
      %923 = vmatprep.subr.bf16.mxu0 0
      %924 = vmatpush1.bf16.msra.mxu0 0
      %925 = vmatprep.subr.bf16.mxu0 0
      %926 = vmatpush1.bf16.msra.mxu0 0
      %927 = vmatprep.subr.bf16.mxu0 0
      %928 = vmatpush1.bf16.msra.mxu0 0
      %929 = vmatprep.subr.bf16.mxu0 0
      %930 = vmatpush1.bf16.msra.mxu0 0
      %931 = vmatprep.subr.bf16.mxu0 0
      %932 = vmatpush1.bf16.msra.mxu0 0
      %933 = vmatprep.subr.bf16.mxu0 0
      %934 = vmatpush1.bf16.msra.mxu0 0
      %935 = vmatprep.subr.bf16.mxu0 0
      %936 = vmatpush1.bf16.msra.mxu0 0
      %937 = vmatprep.subr.bf16.mxu0 0
      %938 = vmatpush1.bf16.msra.mxu0 0
      %939 = vmatprep.subr.bf16.mxu0 0
      %940 = vmatpush1.bf16.msra.mxu0 0
      %941 = vmatprep.subr.bf16.mxu0 0
      %942 = vmatpush1.bf16.msra.mxu0 0
      %943 = vmatprep.subr.bf16.mxu0 0
      %944 = vmatpush1.bf16.msra.mxu0 0
      %945 = vmatprep.subr.bf16.mxu0 0
      %946 = vmatpush1.bf16.msra.mxu0 0
      %947 = vmatprep.subr.bf16.mxu0 0
      %948 = vmatpush1.bf16.msra.mxu0 0
      %949 = vmatprep.subr.bf16.mxu0 0
      %950 = vmatpush1.bf16.msra.mxu0 0
      %951 = vmatprep.mubr.bf16.mxu0 0
      %952 = vmatmul.mubr.bf16.gmra.mrb[0].mxu0 %v914
      %v953 = vpop.f32.mrb[0].mxu0
      %v954 = vadd.f32 0.0, %v953
      %v955 = vpop.f32.mrb[0].mxu0
      %v956 = vpop.f32.mrb[0].mxu0
      %v957 = vpop.f32.mrb[0].mxu0
      %958 = vdwg.mxu0
      %960 = vrot.lane.b32.xlu0 %v954, 64
      %v961 = vpop.permute.xlu0 %960
      %vm963 = vcmask 785920
      %964 = vst.msk [vmem:[#allocation3] sm:$0xff] %vm963, %v961
      %v965 = vld [vmem:[#allocation2] sm:$0xf]
      %v966 = vld [vmem:[#allocation2 + $0x4] sm:$0xf]
      %v967 = vld [vmem:[#allocation2 + $0x8] sm:$0xf]
      %v969 = vunpack.c.l.b16 %v965
      %v970 = vpack.c.b16 %v969, %v969
      %971 = vrot.lane.b32.xlu0 %v970, 32
      %v972 = vpop.permute.xlu0 %971
      %v974 = vunpack.c.l.b16 %v966
      %v975 = vpack.c.b16 %v974, %v974
      %976 = vrot.lane.b32.xlu0 %v975, 32
      %v977 = vpop.permute.xlu0 %976
      %v979 = vsel %vm601, %v972, 0
      %v982 = vsel %vm601, %v977, 0
      %984 = vmatprep.subr.bf16.mxu0 0
      %985 = vmatpush1.bf16.xpose.msra.mxu0 %v982
      %986 = vmatprep.subr.bf16.mxu0 0
      %987 = vmatpush1.bf16.xpose.msra.mxu0 0
      %988 = vmatprep.subr.bf16.mxu0 0
      %989 = vmatpush1.bf16.xpose.msra.mxu0 0
      %990 = vmatprep.subr.bf16.mxu0 0
      %991 = vmatpush1.bf16.xpose.msra.mxu0 0
      %992 = vmatprep.subr.bf16.mxu0 0
      %993 = vmatpush1.bf16.xpose.msra.mxu0 0
      %994 = vmatprep.subr.bf16.mxu0 0
      %995 = vmatpush1.bf16.xpose.msra.mxu0 0
      %996 = vmatprep.subr.bf16.mxu0 0
      %997 = vmatpush1.bf16.xpose.msra.mxu0 0
      %998 = vmatprep.subr.bf16.mxu0 0
      %999 = vmatpush1.bf16.xpose.msra.mxu0 0
      %1000 = vmatprep.subr.bf16.mxu0 0
      %1001 = vmatpush1.bf16.xpose.msra.mxu0 0
      %1002 = vmatprep.subr.bf16.mxu0 0
      %1003 = vmatpush1.bf16.xpose.msra.mxu0 0
      %1004 = vmatprep.subr.bf16.mxu0 0
      %1005 = vmatpush1.bf16.xpose.msra.mxu0 0
      %1006 = vmatprep.subr.bf16.mxu0 0
      %1007 = vmatpush1.bf16.xpose.msra.mxu0 0
      %1008 = vmatprep.subr.bf16.mxu0 0
      %1009 = vmatpush1.bf16.xpose.msra.mxu0 0
      %1010 = vmatprep.subr.bf16.mxu0 0
      %1011 = vmatpush1.bf16.xpose.msra.mxu0 0
      %1012 = vmatprep.subr.bf16.mxu0 0
      %1013 = vmatpush1.bf16.xpose.msra.mxu0 0
      %1014 = vmatprep.subr.bf16.mxu0 0
      %1015 = vmatpush1.bf16.xpose.msra.mxu0 0
      %1016 = vmatprep.mubr.bf16.mxu0 0
      %1017 = vmatmul.mubr.bf16.gmra.mrb[0].mxu0 %v979
      %v1018 = vpop.f32.mrb[0].mxu0
      %v1019 = vadd.f32 %v596, %v1018
      %v1020 = vpop.f32.mrb[0].mxu0
      %v1021 = vpop.f32.mrb[0].mxu0
      %v1022 = vpop.f32.mrb[0].mxu0
      %1023 = vdwg.mxu0
      %v1024 = vsel %vm648, %v1019, -inf
      %1025 = vmax.xlane.f32.xlu0 %v1024
      %v1026 = vpop.xlane.xlu0 %1025
      %v1027 = vsub.f32 %v1019, %v1026
      %v1028 = vmul.f32 %v1027, 1.442695
      %v1029 = vpow.pop %v1028
      %v1030 = vsel %vm648, %v1029, 0.0
      %1031 = vadd.xlane.f32.xlu0 %v1030
      %v1032 = vpop.xlane.xlu0 %1031
      %v1033 = vrcp.pop %v1032
      %v1034 = vmul.f32 %v1029, %v1033
      %v1035 = vpack.c.bf16 %v1034, %v1034
      %v1037 = vunpack.c.l.b16 %v967
      %v1038 = vpack.c.b16 %v1037, %v1037
      %1039 = vrot.lane.b32.xlu0 %v1038, 32
      %v1040 = vpop.permute.xlu0 %1039
      %v1042 = vsel %vm648, %v1035, 0
      %v1045 = vsel %vm664, %v1040, 0
      %1047 = vmatprep.subr.bf16.mxu0 0
      %1048 = vmatpush1.bf16.msra.mxu0 %v1045
      %1049 = vmatprep.subr.bf16.mxu0 0
      %1050 = vmatpush1.bf16.msra.mxu0 0
      %1051 = vmatprep.subr.bf16.mxu0 0
      %1052 = vmatpush1.bf16.msra.mxu0 0
      %1053 = vmatprep.subr.bf16.mxu0 0
      %1054 = vmatpush1.bf16.msra.mxu0 0
      %1055 = vmatprep.subr.bf16.mxu0 0
      %1056 = vmatpush1.bf16.msra.mxu0 0
      %1057 = vmatprep.subr.bf16.mxu0 0
      %1058 = vmatpush1.bf16.msra.mxu0 0
      %1059 = vmatprep.subr.bf16.mxu0 0
      %1060 = vmatpush1.bf16.msra.mxu0 0
      %1061 = vmatprep.subr.bf16.mxu0 0
      %1062 = vmatpush1.bf16.msra.mxu0 0
      %1063 = vmatprep.subr.bf16.mxu0 0
      %1064 = vmatpush1.bf16.msra.mxu0 0
      %1065 = vmatprep.subr.bf16.mxu0 0
      %1066 = vmatpush1.bf16.msra.mxu0 0
      %1067 = vmatprep.subr.bf16.mxu0 0
      %1068 = vmatpush1.bf16.msra.mxu0 0
      %1069 = vmatprep.subr.bf16.mxu0 0
      %1070 = vmatpush1.bf16.msra.mxu0 0
      %1071 = vmatprep.subr.bf16.mxu0 0
      %1072 = vmatpush1.bf16.msra.mxu0 0
      %1073 = vmatprep.subr.bf16.mxu0 0
      %1074 = vmatpush1.bf16.msra.mxu0 0
      %1075 = vmatprep.subr.bf16.mxu0 0
      %1076 = vmatpush1.bf16.msra.mxu0 0
      %1077 = vmatprep.subr.bf16.mxu0 0
      %1078 = vmatpush1.bf16.msra.mxu0 0
      %1079 = vmatprep.mubr.bf16.mxu0 0
      %1080 = vmatmul.mubr.bf16.gmra.mrb[0].mxu0 %v1042
      %v1081 = vpop.f32.mrb[0].mxu0
      %v1082 = vadd.f32 0.0, %v1081
      %v1083 = vpop.f32.mrb[0].mxu0
      %v1084 = vpop.f32.mrb[0].mxu0
      %v1085 = vpop.f32.mrb[0].mxu0
      %1086 = vdwg.mxu0
      %1088 = vrot.lane.b32.xlu0 %v1082, 96
      %v1089 = vpop.permute.xlu0 %1088
      %vm1091 = vcmask 1048320
      %1092 = vst.msk [vmem:[#allocation3] sm:$0xff] %vm1091, %v1089
      %v1093 = vld [vmem:[#allocation3] sm:$0xff]
      %v1094 = vpack.c.bf16 %v1093, %v1093
      %v1095 = vld [vmem:[%s4] sm:$0xf]
      %v1096 = vld [vmem:[%s4 + $0x4] sm:$0xf]
      %v1097 = vld [vmem:[%s4 + $0x8] sm:$0xf]
      %v1098 = vld [vmem:[%s4 + $0xc] sm:$0xf]
      %v1099 = vld [vmem:[%s4 + $0x10] sm:$0xf]
      %v1100 = vld [vmem:[%s4 + $0x14] sm:$0xf]
      %v1101 = vld [vmem:[%s4 + $0x18] sm:$0xf]
      %v1102 = vld [vmem:[%s4 + $0x1c] sm:$0xf]
      %v1103 = vld [vmem:[%s4 + $0x20] sm:$0xf]
      %v1104 = vld [vmem:[%s4 + $0x24] sm:$0xf]
      %v1105 = vld [vmem:[%s4 + $0x28] sm:$0xf]
      %v1106 = vld [vmem:[%s4 + $0x2c] sm:$0xf]
      %v1107 = vld [vmem:[%s4 + $0x30] sm:$0xf]
      %v1108 = vld [vmem:[%s4 + $0x34] sm:$0xf]
      %v1109 = vld [vmem:[%s4 + $0x38] sm:$0xf]
      %v1110 = vld [vmem:[%s4 + $0x3c] sm:$0xf]
      %v1111 = vld [vmem:[%s5] sm:$0x1]
      %v1113 = vlaneseq
      %v1114 = vshrl.u32 %v1113, 7
      %v1115 = vsub.s32 0, %v1114
      %v1116 = vrot.slane %v1111, %v1115
      %v1134 = vunpack.c.l.b16 %v1095
      %v1135 = vunpack.c.l.b16 %v1096
      %v1136 = vunpack.c.l.b16 %v1097
      %v1137 = vunpack.c.l.b16 %v1098
      %v1138 = vunpack.c.l.b16 %v1099
      %v1139 = vunpack.c.l.b16 %v1100
      %v1140 = vunpack.c.l.b16 %v1101
      %v1141 = vunpack.c.l.b16 %v1102
      %v1142 = vunpack.c.l.b16 %v1103
      %v1143 = vunpack.c.l.b16 %v1104
      %v1144 = vunpack.c.l.b16 %v1105
      %v1145 = vunpack.c.l.b16 %v1106
      %v1146 = vunpack.c.l.b16 %v1107
      %v1147 = vunpack.c.l.b16 %v1108
      %v1148 = vunpack.c.l.b16 %v1109
      %v1149 = vunpack.c.l.b16 %v1110
      %v1150 = vpack.c.b16 %v1135, %v1134
      %v1151 = vpack.c.b16 %v1137, %v1136
      %v1152 = vpack.c.b16 %v1139, %v1138
      %v1153 = vpack.c.b16 %v1141, %v1140
      %v1154 = vpack.c.b16 %v1143, %v1142
      %v1155 = vpack.c.b16 %v1145, %v1144
      %v1156 = vpack.c.b16 %v1147, %v1146
      %v1157 = vpack.c.b16 %v1149, %v1148
      %1166 = vmatprep.subr.bf16.mxu0 0
      %1167 = vmatpush1.bf16.msra.mxu0 %v1150
      %1168 = vmatprep.subr.bf16.mxu0 0
      %1169 = vmatpush1.bf16.msra.mxu0 %v1151
      %1170 = vmatprep.subr.bf16.mxu0 0
      %1171 = vmatpush1.bf16.msra.mxu0 %v1152
      %1172 = vmatprep.subr.bf16.mxu0 0
      %1173 = vmatpush1.bf16.msra.mxu0 %v1153
      %1174 = vmatprep.subr.bf16.mxu0 0
      %1175 = vmatpush1.bf16.msra.mxu0 %v1154
      %1176 = vmatprep.subr.bf16.mxu0 0
      %1177 = vmatpush1.bf16.msra.mxu0 %v1155
      %1178 = vmatprep.subr.bf16.mxu0 0
      %1179 = vmatpush1.bf16.msra.mxu0 %v1156
      %1180 = vmatprep.subr.bf16.mxu0 0
      %1181 = vmatpush1.bf16.msra.mxu0 %v1157
      %1182 = vmatprep.subr.bf16.mxu0 0
      %1183 = vmatpush1.bf16.msra.mxu0 0
      %1184 = vmatprep.subr.bf16.mxu0 0
      %1185 = vmatpush1.bf16.msra.mxu0 0
      %1186 = vmatprep.subr.bf16.mxu0 0
      %1187 = vmatpush1.bf16.msra.mxu0 0
      %1188 = vmatprep.subr.bf16.mxu0 0
      %1189 = vmatpush1.bf16.msra.mxu0 0
      %1190 = vmatprep.subr.bf16.mxu0 0
      %1191 = vmatpush1.bf16.msra.mxu0 0
      %1192 = vmatprep.subr.bf16.mxu0 0
      %1193 = vmatpush1.bf16.msra.mxu0 0
      %1194 = vmatprep.subr.bf16.mxu0 0
      %1195 = vmatpush1.bf16.msra.mxu0 0
      %1196 = vmatprep.subr.bf16.mxu0 0
      %1197 = vmatpush1.bf16.msra.mxu0 0
      %1198 = vmatprep.mubr.bf16.mxu0 0
      %1199 = vmatmul.mubr.bf16.gmra.mrb[0].mxu0 %v1094
      %v1200 = vpop.f32.mrb[0].mxu0
      %v1201 = vadd.f32 %v1116, %v1200
      %v1202 = vpop.f32.mrb[0].mxu0
      %v1203 = vpop.f32.mrb[0].mxu0
      %v1204 = vpop.f32.mrb[0].mxu0
      %1205 = vdwg.mxu0
      %v1206 = vld [vmem:[%s307] sm:$0xff]
      %v1207 = vadd.f32 %v1206, %v1201
      %1208 = vadd.xlane.f32.xlu0 %v1207
      %v1209 = vpop.xlane.xlu0 %1208
      %v1210 = vrcp.pop 128.0
      %v1211 = vmul.f32 %v1209, %v1210
      %v1212 = vsub.f32 %v1207, %v1211
      %v1213 = vmul.f32 %v1212, %v1212
      %1214 = vadd.xlane.f32.xlu0 %v1213
      %v1215 = vpop.xlane.xlu0 %1214
      %v1216 = vmul.f32 %v1215, %v1210
      %v1217 = vadd.f32 %v1216, 1e-05
      %v1218 = vrsqrt.pop %v1217
      %v1219 = vmul.f32 %v1212, %v1218
      %v1220 = vld [vmem:[%s6] sm:$0x1]
      %v1222 = vlaneseq
      %v1223 = vshrl.u32 %v1222, 7
      %v1224 = vsub.s32 0, %v1223
      %v1225 = vrot.slane %v1220, %v1224
      %v1227 = vmul.f32 %v1219, %v1225
      %v1228 = vld [vmem:[%s7] sm:$0x1]
      %v1230 = vlaneseq
      %v1231 = vshrl.u32 %v1230, 7
      %v1232 = vsub.s32 0, %v1231
      %v1233 = vrot.slane %v1228, %v1232
      %v1235 = vadd.f32 %v1227, %v1233
      %1236 = vst [vmem:[%s314] sm:$0xff] %v1235
      %p1237 = scmp.lt.s32.totalorder %s19, 1
      %s1238 = scalar_select %p1237, %s19, 1
      %s1239 = smul.addr %s1238, 8
      %s1240 = scalar_lea.vmem %s8, %s1239
      // Predicated region
      $region53: #{transformer_encoder_layer_no_ffn.1} parent=51 // pred_check
        %p1241 = pneg %p215
      $region54: #{transformer_encoder_layer_no_ffn.1} parent=51 // pred_check_branch
        %1243 = sbr.rel (%p1241) target = $region56
      $region55: #{transformer_encoder_layer_no_ffn.1} parent=51 // pred_region
        _
      $region56: #{transformer_encoder_layer_no_ffn.1} parent=51 // pred_fallthru
        _
    $region52: #{transformer_encoder_layer_no_ffn.1} parent=5 // pred_fallthru
      _
    %p1244 = scmp.le.s32.totalorder 2, %s14
    // Predicated region
    $region57: #{transformer_encoder_layer_no_ffn.1} parent=5 // pred_check
      %p1245 = pneg %p1244
    $region58: #{transformer_encoder_layer_no_ffn.1} parent=5 // pred_check_branch
      %1247 = sbr.rel (%p1245) target = $region60
    $region59: #{transformer_encoder_layer_no_ffn.1} parent=5 // pred_region
      %s1248 = ssub.s32 %s14, 2
      // Predicated region
      $region61: #{transformer_encoder_layer_no_ffn.1} parent=59 // pred_check
        %p1249 = pneg %p221
      $region62: #{transformer_encoder_layer_no_ffn.1} parent=59 // pred_check_branch
        %1251 = sbr.rel (%p1249) target = $region64
      $region63: #{transformer_encoder_layer_no_ffn.1} parent=59 // pred_region
        %p1252 = scmp.lt.s32.totalorder %s20, 1
        %s1253 = scalar_select %p1252, %s20, 1
        %s1254 = smul.addr %s1253, 8
        %s1255 = scalar_lea.vmem %s8, %s1254
      $region64: #{transformer_encoder_layer_no_ffn.1} parent=59 // pred_fallthru
        _
    $region60: #{transformer_encoder_layer_no_ffn.1} parent=5 // pred_fallthru
      _
  $region6: #{transformer_encoder_layer_no_ffn.1} parent=0 // loop_footer
    %s18 = sadd.s32 1, %s14
  $region7: #{transformer_encoder_layer_no_ffn.1} parent=0 // loop_footer_branch
    %13 = sbr.rel target = $region3
  $region8: #{transformer_encoder_layer_no_ffn.1} parent=0 // loop_exit
    _

</llo_original>
